<compile_context>
chip_gen: v6e
topology: v6e:2x2x1
jax: 0.10.0
libtpu: 0.0.40
codegen_flags: <defaults>
</compile_context>

<pallas_src>
import functools
import math

import jax
import jax.numpy as jnp
import numpy as np
from jax.experimental import pallas as pl
from jax.experimental.pallas import tpu as pltpu


def _round_up(x, m):
    return (x + m - 1) // m * m


# ----------------------------------------------------------------------------
# pltpu.roll direction probe.  pltpu.roll is documented to match jnp.roll; a
# one-time (8,128) probe pins the rotation direction so the conv taps can
# never be silently reversed, and falls back to slice-based taps if roll does
# not lower on this platform.
# ----------------------------------------------------------------------------
def _roll_probe_kernel(x_ref, o_ref):
    o_ref[...] = pltpu.roll(x_ref[...], shift=1, axis=1)


@functools.lru_cache(maxsize=None)
def _pltpu_roll_sign():
    x = jnp.tile(jnp.arange(128, dtype=jnp.float32), (8, 1))
    got = pl.pallas_call(
        _roll_probe_kernel,
        out_shape=jax.ShapeDtypeStruct((8, 128), jnp.float32))(x)
    return 1 if bool(jnp.all(got == jnp.roll(x, 1, axis=1))) else -1


def _roll_sign_for(D):
    if D % 128 != 0:
        return 0                      # not lane-aligned: use slice-based taps
    try:
        return _pltpu_roll_sign()
    except Exception:                 # pragma: no cover - conservative fallback
        return 0


# ----------------------------------------------------------------------------
# Kernel 1: feature path (runs once; output h is reused by the score kernel).
# ----------------------------------------------------------------------------
def _feature_kernel(channels, fs, pad, roll_sign,
                    bn0s_ref, bn0b_ref, convw_ref, convb_ref,
                    bn1s_ref, bn1b_ref,
                    e1_ref, rel_ref, fcw_ref, fcb_ref,
                    bn2s_ref, bn2b_ref, h_ref):
    Bp, D = e1_ref.shape

    # bn0 folded per stacked channel (channel 0 = e1, channel 1 = rel).
    e1 = e1_ref[...] * bn0s_ref[0] + bn0b_ref[0]
    rel = rel_ref[...] * bn0s_ref[1] + bn0b_ref[1]
    inputs = (e1, rel)

    if roll_sign != 0:
        # Lane-aligned path: shifted conv taps via an XLU lane rotation plus a
        # single-compare boundary mask (the conv's zero padding).  Taps are
        # rebuilt inside the channel loop, so only a handful of (Bp, D) values
        # are live at any time (no vreg-pressure blowup at large fs/channels).
        lane = jax.lax.broadcasted_iota(jnp.int32, (Bp, D), 1)

        def tap(ch, t):
            s = t - pad                    # y[:, o] = x[:, o + s], zero-padded
            x = inputs[ch]
            if s == 0:
                return x
            rolled = pltpu.roll(x, shift=(-s * roll_sign) % D, axis=1)
            valid = (lane < (D - s)) if s > 0 else (lane >= (-s))
            return jnp.where(valid, rolled, 0.0)
    else:
        # Fallback for embedding dims that are not lane-aligned (D % 128 != 0):
        # build the zero-padded rows once, slice lazily inside the loop.
        zpad = jnp.zeros((Bp, pad), dtype=jnp.float32)
        padded = tuple(
            jnp.concatenate([zpad, x, zpad], axis=1) if pad > 0 else x
            for x in inputs)

        def tap(ch, t):
            return padded[ch][:, t:t + D]

    # Conv1d(in=2, out=channels, k=fs, stride=1) unrolled as scalar-weight
    # FMAs, then bn1 + relu.  The fc matmul is accumulated per channel
    # (h += chan_out_c @ W_c) so every MXU operand stays lane-aligned — no
    # lane-axis concatenation of channel blocks.
    h = jnp.zeros((Bp, D), dtype=jnp.float32)
    for c in range(channels):
        acc = jnp.zeros((Bp, D), dtype=jnp.float32) + convb_ref[c]
        for ch in range(2):
            for t in range(fs):
                w = convw_ref[(c * 2 + ch) * fs + t]      # scalar from SMEM
                acc = acc + w * tap(ch, t)
        acc = acc * bn1s_ref[c] + bn1b_ref[c]             # bn1 (per channel)
        acc = jnp.maximum(acc, 0.0)                       # relu
        h = h + jnp.dot(acc, fcw_ref[c],                  # fc, channel slice
                        preferred_element_type=jnp.float32)

    h = h + fcb_ref[...]
    h = h * bn2s_ref[...] + bn2b_ref[...]                 # bn2 (per feature)
    h_ref[...] = jnp.maximum(h, 0.0).astype(h_ref.dtype)  # relu (+ bf16 cast)


# ----------------------------------------------------------------------------
# Kernel 2: streamed score matmul over entity tiles.
#   scores_tile = h @ ent_tile.T + b_tile
# ----------------------------------------------------------------------------
def _score_kernel(h_ref, ent_ref, bvec_ref, out_ref):
    h = h_ref[...]
    if h.dtype != ent_ref.dtype:
        h = h.astype(ent_ref.dtype)
    # Contract on the minor dim of both operands (same pattern as the
    # canonical flash-attention q @ k^T): keeps the streamed entity tile in
    # its natural, fully contiguous (TE, D) HBM layout and the output
    # lane-dense (Bp, TE).
    scores = jax.lax.dot_general(
        h, ent_ref[...],
        dimension_numbers=(((1,), (1,)), ((), ())),
        preferred_element_type=jnp.float32)
    out_ref[...] = scores + bvec_ref[...]


def _entity_block_spec(TE, D, n_buf):
    # Triple-buffer the dominant HBM stream when the grid is deep enough.
    if n_buf >= 3 and hasattr(pl, "Buffered"):
        try:
            return pl.BlockSpec((TE, D), lambda j: (j, 0),
                                pipeline_mode=pl.Buffered(3))
        except TypeError:             # pragma: no cover - older BlockSpec API
            pass
    return pl.BlockSpec((TE, D), lambda j: (j, 0))


# ----------------------------------------------------------------------------
# One-time preprocessing: fold BN, reshape weights, cast + pad entity table,
# choose the entity tile size from a v7x-safe VMEM budget.
# ----------------------------------------------------------------------------
def transconve_prepare(params, all_ent_emb, *,
                       entity_tile=4096,
                       ent_dtype=jnp.bfloat16,
                       vmem_budget_bytes=24 * 1024 * 1024,
                       batch_hint=8):
    E, D = all_ent_emb.shape
    channels = params["channels"]
    fs = params["filter_size"]
    pad = params["padding"]
    eps = 1e-5

    assert fs < D
    assert fs % 2 == 1, "even filter sizes give conv_out = D + 1 (unsupported)"
    # TODO(synk): support even filter_size (conv_out = D + 1) if ever needed.
    conv_out = D  # odd fs with pad = fs // 2  =>  conv output length == D

    def fold_bn(gamma, beta, mean, var):
        scale = gamma / jnp.sqrt(var + eps)
        shift = beta - mean * scale
        return scale.astype(jnp.float32), shift.astype(jnp.float32)

    bn0_s, bn0_b = fold_bn(*params["bn0"])
    bn1_s, bn1_b = fold_bn(*params["bn1"])
    bn2_s, bn2_b = fold_bn(*params["bn2"])

    convw_flat = params["conv_w"].reshape(-1).astype(jnp.float32)
    convb = params["conv_b"].astype(jnp.float32)
    # fc weight (D, channels*conv_out) -> per-channel (channels, conv_out, D)
    fcw_per_chan = (params["fc_w"].astype(jnp.float32)
                    .reshape(D, channels, conv_out).transpose(1, 2, 0))
    fcb_2d = params["fc_b"].reshape(1, D).astype(jnp.float32)
    bn2_s2d = bn2_s.reshape(1, D)
    bn2_b2d = bn2_b.reshape(1, D)

    # Entity tile size: large tiles amortize the ~0.35 us/grid-step overhead,
    # but triple-buffered entity tiles + double-buffered output tiles must fit
    # a v7x-safe VMEM budget (64 MiB physical, ~32 MiB scoped default there),
    # and we keep TE < E so the grid has >= 2 steps (second TC on v7x).
    ent_dtype = jnp.dtype(ent_dtype)
    ent_itemsize = ent_dtype.itemsize
    Bp_hint = max(8, _round_up(batch_hint, 8))
    per_te_bytes = 3 * D * ent_itemsize + 2 * Bp_hint * 4 + 2 * 4
    te_cap_vmem = max(
        128, (vmem_budget_bytes - Bp_hint * D * 4) // per_te_bytes // 128 * 128)
    te_cap_2steps = max(128, (E - 1) // 128 * 128)     # TE < E => >= 2 steps
    TE = max(128, min(_round_up(entity_tile, 128), te_cap_vmem, te_cap_2steps))
    E_pad = _round_up(E, TE)

    # Pad + cast ONCE here (outside the per-call hot path).  Padded rows are
    # zero; their (garbage-free) score columns are sliced away in forward().
    ent = jnp.pad(all_ent_emb.astype(ent_dtype), ((0, E_pad - E), (0, 0)))
    b_row = jnp.pad(params["b"].astype(jnp.float32),
                    (0, E_pad - E)).reshape(1, E_pad)

    return dict(
        D=D, E=E, E_pad=E_pad, TE=TE, channels=channels, fs=fs, pad=pad,
        ent_dtype=ent_dtype,
        bn0_s=bn0_s, bn0_b=bn0_b, convw=convw_flat, convb=convb,
        bn1_s=bn1_s, bn1_b=bn1_b, fcw=fcw_per_chan, fcb=fcb_2d,
        bn2_s=bn2_s2d, bn2_b=bn2_b2d,
        ent=ent, b_row=b_row,
    )


# ----------------------------------------------------------------------------
# Per-call forward: feature kernel (once) + streamed score kernel.
# ----------------------------------------------------------------------------
def transconve_forward(e1_emb, rel_emb, prep):
    B, D = e1_emb.shape
    assert D == prep["D"]
    E, E_pad, TE = prep["E"], prep["E_pad"], prep["TE"]
    channels, fs, pad = prep["channels"], prep["fs"], prep["pad"]
    ent_dtype = prep["ent_dtype"]

    # Pad the batch to a multiple of 8 sublanes (unmasked MXU rows / stores).
    Bp = max(8, _round_up(B, 8))
    e1_p = jnp.pad(e1_emb.astype(jnp.float32), ((0, Bp - B), (0, 0)))
    rel_p = jnp.pad(rel_emb.astype(jnp.float32), ((0, Bp - B), (0, 0)))

    smem = lambda: pl.BlockSpec(memory_space=pltpu.MemorySpace.SMEM)
    vmem = lambda: pl.BlockSpec(memory_space=pltpu.MemorySpace.VMEM)

    # ---- kernel 1: compute h once (written in the entity dtype) ----------
    roll_sign = _roll_sign_for(D)
    feature_kernel = functools.partial(_feature_kernel,
                                       channels, fs, pad, roll_sign)
    h = pl.pallas_call(
        feature_kernel,
        out_shape=jax.ShapeDtypeStruct((Bp, D), ent_dtype),
        in_specs=[smem() for _ in range(6)] + [vmem() for _ in range(6)],
        out_specs=vmem(),
    )(prep["bn0_s"], prep["bn0_b"], prep["convw"], prep["convb"],
      prep["bn1_s"], prep["bn1_b"],
      e1_p, rel_p, prep["fcw"], prep["fcb"], prep["bn2_s"], prep["bn2_b"])

    # ---- kernel 2: streamed, multi-buffered score matmul ------------------
    num_tiles = E_pad // TE
    ent_itemsize = ent_dtype.itemsize
    n_ent_buf = 3 if num_tiles >= 3 else 2

    cost = pl.CostEstimate(
        flops=2 * Bp * D * E_pad,
        transcendentals=0,
        bytes_accessed=(E_pad * D * ent_itemsize + Bp * E_pad * 4
                        + Bp * D * ent_itemsize + E_pad * 4),
    )
    vmem_need = (n_ent_buf * TE * D * ent_itemsize   # buffered entity tiles
                 + 2 * Bp * TE * 4                   # double-buffered outputs
                 + 2 * TE * 4                        # bias tiles
                 + 2 * Bp * D * ent_itemsize)        # resident h
    vmem_limit = int(min(48 << 20,
                         max(16 << 20, vmem_need + vmem_need // 4 + (2 << 20))))

    scores = pl.pallas_call(
        _score_kernel,
        out_shape=jax.ShapeDtypeStruct((Bp, E_pad), jnp.float32),
        grid=(num_tiles,),
        in_specs=[
            pl.BlockSpec((Bp, D), lambda j: (0, 0)),       # h, resident
            _entity_block_spec(TE, D, n_ent_buf),          # streamed entities
            pl.BlockSpec((1, TE), lambda j: (0, j)),       # bias tile
        ],
        out_specs=pl.BlockSpec((Bp, TE), lambda j: (0, j)),  # lane-dense out
        compiler_params=pltpu.CompilerParams(
            dimension_semantics=("parallel",),             # megacore on v7x
            vmem_limit_bytes=vmem_limit,
        ),
        cost_estimate=cost,
    )(h, prep["ent"], prep["b_row"])

    # TODO(synk): when B == Bp and E == E_pad this slice is a no-op copy that
    #             could be skipped entirely.
    return scores[:B, :E]


# ----------------------------------------------------------------------------
# Pure-JAX reference (eval-mode semantics) for verification.
# ----------------------------------------------------------------------------
def reference_hidden(e1_emb, rel_emb, params):
    eps = 1e-5
    pad = params["padding"]

    def bn(x, gamma, beta, mean, var, shape):
        g, b, m, v = [a.reshape(shape) for a in (gamma, beta, mean, var)]
        return (x - m) / jnp.sqrt(v + eps) * g + b

    B, D = e1_emb.shape
    x = jnp.stack([e1_emb, rel_emb], axis=1)                       # (B,2,D)
    x = bn(x, *params["bn0"], (1, 2, 1))
    x = jax.lax.conv_general_dilated(
        x, params["conv_w"], window_strides=(1,), padding=[(pad, pad)],
        dimension_numbers=("NCH", "OIH", "NCH"))
    x = x + params["conv_b"][None, :, None]
    x = bn(x, *params["bn1"], (1, params["channels"], 1))
    x = jnp.maximum(x, 0.0)
    x = x.reshape(B, -1)
    x = x @ params["fc_w"].T + params["fc_b"]
    x = bn(x, *params["bn2"], (1, D))
    return jnp.maximum(x, 0.0)


def reference_forward(e1_emb, rel_emb, all_ent_emb, params):
    h = reference_hidden(e1_emb, rel_emb, params)
    return h @ all_ent_emb.T + params["b"][None, :]


# ----------------------------------------------------------------------------
if __name__ == "__main__":
    # Small synthetic config (matches the module's __init__ shape logic).
    B = 2              # batch
    D = 128            # args.ent_embed_dim (lane-aligned, realistic-ish)
    channels = 4       # args.conv_channels
    fs = 3             # args.conv_filter_size (odd => conv_out == D)
    pad = int(math.floor(fs / 2))
    E = 300            # num_entities (exercises multiple entity tiles)
    conv_out = (D - fs + 2 * pad) // 1 + 1
    conv_hid = channels * conv_out

    key = jax.random.PRNGKey(0)
    keys = jax.random.split(key, 12)

    # Deterministic parameter init (synthetic; mirrors shapes in __init__).
    conv_w = jax.random.uniform(keys[0], (channels, 2, fs), jnp.float32,
                                -0.5, 0.5)                    # kaiming-ish
    conv_b = jax.random.uniform(keys[1], (channels,), jnp.float32, -0.1, 0.1)
    fc_w = 0.05 * jax.random.normal(keys[2], (D, conv_hid), jnp.float32)
    fc_b = jax.random.uniform(keys[3], (D,), jnp.float32, -0.1, 0.1)
    b_param = 0.1 * jax.random.normal(keys[4], (E,), jnp.float32)

    # Non-trivial eval-mode BatchNorm statistics (exercise the BN folding).
    def bn_stats(n, k):
        k1, k2, k3, k4 = jax.random.split(k, 4)
        gamma = jax.random.uniform(k1, (n,), jnp.float32, 0.8, 1.2)
        beta = jax.random.uniform(k2, (n,), jnp.float32, -0.1, 0.1)
        mean = jax.random.uniform(k3, (n,), jnp.float32, -0.2, 0.2)
        var = jax.random.uniform(k4, (n,), jnp.float32, 0.5, 1.5)
        return gamma, beta, mean, var

    params = dict(
        channels=channels, filter_size=fs, padding=pad,
        conv_w=conv_w, conv_b=conv_b, fc_w=fc_w, fc_b=fc_b, b=b_param,
        bn0=bn_stats(2, keys[5]), bn1=bn_stats(channels, keys[6]),
        bn2=bn_stats(D, keys[7]),
    )

    # Inputs.
    e1_emb = jax.random.normal(keys[8], (B, D), jnp.float32)
    rel_emb = jax.random.normal(keys[9], (B, D), jnp.float32)
    all_ent_emb = jax.random.normal(keys[10], (E, D), jnp.float32)

    # Default fast path: bf16 entity stream.  entity_tile=128 here so the
    # small demo still gets >= 3 grid steps and exercises Buffered(3).
    prep_bf16 = transconve_prepare(params, all_ent_emb, entity_tile=128,
                                   ent_dtype=jnp.bfloat16)
    out_bf16 = transconve_forward(e1_emb, rel_emb, prep_bf16)

    # f32 entity stream for a strict end-to-end numerical check.
    prep_f32 = transconve_prepare(params, all_ent_emb, ent_dtype=jnp.float32)
    out_f32 = transconve_forward(e1_emb, rel_emb, prep_f32)

    out_bf16, out_f32 = jax.block_until_ready((out_bf16, out_f32))

    # f32 path vs pure-JAX f32 reference.
    ref_f32 = reference_forward(e1_emb, rel_emb, all_ent_emb, params)
    np.testing.assert_allclose(np.asarray(out_f32), np.asarray(ref_f32),
                               rtol=5e-4, atol=5e-4)

    # bf16 path vs a bf16-consistent reference (h and the entity table rounded
    # to bf16, products accumulated in f32 — same as the MXU does).
    h_ref = reference_hidden(e1_emb, rel_emb, params)
    h_bf = h_ref.astype(jnp.bfloat16).astype(jnp.float32)
    ent_bf = all_ent_emb.astype(jnp.bfloat16).astype(jnp.float32)
    ref_bf16 = h_bf @ ent_bf.T + b_param[None, :]
    np.testing.assert_allclose(np.asarray(out_bf16), np.asarray(ref_bf16),
                               rtol=1e-2, atol=2e-2)

    print("KERNEL_OK")
</pallas_src>

<mosaic_0001>
module attributes {stable_mosaic.version = 11 : i64} {
  func.func @_roll_probe_kernel(%arg0: memref<8x128xf32, #tpu.memory_space<vmem>>, %arg1: memref<8x128xf32, #tpu.memory_space<vmem>>) attributes {dimension_semantics = [], scalar_prefetch = 0 : i64, scratch_operands = 0 : i64, tpu.core_type = #tpu.core_type<tc>} {
    %c0 = arith.constant 0 : index
    %c0_0 = arith.constant 0 : index
    %0 = vector.load %arg0[%c0, %c0_0] : memref<8x128xf32, #tpu.memory_space<vmem>>, vector<8x128xf32>
    %c1_i32 = arith.constant 1 : i32
    %1 = tpu.dynamic_rotate %0 by %c1_i32 dim 1 : vector<8x128xf32>, i32 -> vector<8x128xf32>
    %c0_1 = arith.constant 0 : index
    %c0_2 = arith.constant 0 : index
    %2 = vector.load %arg1[%c0_1, %c0_2] : memref<8x128xf32, #tpu.memory_space<vmem>>, vector<8x128xf32>
    tpu.vector_store %arg1[%c0_1, %c0_2], %1 {strides = array<i32>} : memref<8x128xf32, #tpu.memory_space<vmem>>, vector<8x128xf32>,
    return
  }
}

module attributes {stable_mosaic.version = 11 : i64} {
  func.func @_feature_kernel(%arg0: memref<2xf32, #tpu.memory_space<smem>>, %arg1: memref<2xf32, #tpu.memory_space<smem>>, %arg2: memref<24xf32, #tpu.memory_space<smem>>, %arg3: memref<4xf32, #tpu.memory_space<smem>>, %arg4: memref<4xf32, #tpu.memory_space<smem>>, %arg5: memref<4xf32, #tpu.memory_space<smem>>, %arg6: memref<8x128xf32, #tpu.memory_space<vmem>>, %arg7: memref<8x128xf32, #tpu.memory_space<vmem>>, %arg8: memref<4x128x128xf32, #tpu.memory_space<vmem>>, %arg9: memref<1x128xf32, #tpu.memory_space<vmem>>, %arg10: memref<1x128xf32, #tpu.memory_space<vmem>>, %arg11: memref<1x128xf32, #tpu.memory_space<vmem>>, %arg12: memref<8x128xbf16, #tpu.memory_space<vmem>>) attributes {dimension_semantics = [], scalar_prefetch = 0 : i64, scratch_operands = 0 : i64, tpu.core_type = #tpu.core_type<tc>} {
    %c0 = arith.constant 0 : index
    %c0_0 = arith.constant 0 : index
    %0 = vector.load %arg6[%c0, %c0_0] : memref<8x128xf32, #tpu.memory_space<vmem>>, vector<8x128xf32>
    %c0_1 = arith.constant 0 : index
    %1 = memref.load %arg0[%c0_1] : memref<2xf32, #tpu.memory_space<smem>>
    %2 = vector.broadcast %1 : f32 to vector<8x128xf32>
    %3 = arith.mulf %0, %2 : vector<8x128xf32>
    %c0_2 = arith.constant 0 : index
    %4 = memref.load %arg1[%c0_2] : memref<2xf32, #tpu.memory_space<smem>>
    %5 = vector.broadcast %4 : f32 to vector<8x128xf32>
    %6 = arith.addf %3, %5 : vector<8x128xf32>
    %c0_3 = arith.constant 0 : index
    %c0_4 = arith.constant 0 : index
    %7 = vector.load %arg7[%c0_3, %c0_4] : memref<8x128xf32, #tpu.memory_space<vmem>>, vector<8x128xf32>
    %c1 = arith.constant 1 : index
    %8 = memref.load %arg0[%c1] : memref<2xf32, #tpu.memory_space<smem>>
    %9 = vector.broadcast %8 : f32 to vector<8x128xf32>
    %10 = arith.mulf %7, %9 : vector<8x128xf32>
    %c1_5 = arith.constant 1 : index
    %11 = memref.load %arg1[%c1_5] : memref<2xf32, #tpu.memory_space<smem>>
    %12 = vector.broadcast %11 : f32 to vector<8x128xf32>
    %13 = arith.addf %10, %12 : vector<8x128xf32>
    %cst = arith.constant 0.000000e+00 : f32
    %14 = vector.broadcast %cst : f32 to vector<8x1xf32>
    %15 = tpu.concatenate %14, %6, %14 in 1 : vector<8x1xf32>, vector<8x128xf32>, vector<8x1xf32> -> vector<8x130xf32>
    %16 = tpu.concatenate %14, %13, %14 in 1 : vector<8x1xf32>, vector<8x128xf32>, vector<8x1xf32> -> vector<8x130xf32>
    %cst_6 = arith.constant 0.000000e+00 : f32
    %17 = vector.broadcast %cst_6 : f32 to vector<8x128xf32>
    %cst_7 = arith.constant 0.000000e+00 : f32
    %18 = vector.broadcast %cst_7 : f32 to vector<8x128xf32>
    %c0_8 = arith.constant 0 : index
    %19 = memref.load %arg3[%c0_8] : memref<4xf32, #tpu.memory_space<smem>>
    %20 = vector.broadcast %19 : f32 to vector<8x128xf32>
    %21 = arith.addf %18, %20 : vector<8x128xf32>
    %c0_9 = arith.constant 0 : index
    %22 = memref.load %arg2[%c0_9] : memref<24xf32, #tpu.memory_space<smem>>
    %23 = vector.extract_strided_slice %15 {offsets = [0, 0], sizes = [8, 128], strides = [1, 1]} : vector<8x130xf32> to vector<8x128xf32>
    %24 = vector.broadcast %22 : f32 to vector<8x128xf32>
    %25 = arith.mulf %24, %23 : vector<8x128xf32>
    %26 = arith.addf %21, %25 : vector<8x128xf32>
    %c1_10 = arith.constant 1 : index
    %27 = memref.load %arg2[%c1_10] : memref<24xf32, #tpu.memory_space<smem>>
    %28 = vector.extract_strided_slice %15 {offsets = [0, 1], sizes = [8, 128], strides = [1, 1]} : vector<8x130xf32> to vector<8x128xf32>
    %29 = vector.broadcast %27 : f32 to vector<8x128xf32>
    %30 = arith.mulf %29, %28 : vector<8x128xf32>
    %31 = arith.addf %26, %30 : vector<8x128xf32>
    %c2 = arith.constant 2 : index
    %32 = memref.load %arg2[%c2] : memref<24xf32, #tpu.memory_space<smem>>
    %33 = vector.extract_strided_slice %15 {offsets = [0, 2], sizes = [8, 128], strides = [1, 1]} : vector<8x130xf32> to vector<8x128xf32>
    %34 = vector.broadcast %32 : f32 to vector<8x128xf32>
    %35 = arith.mulf %34, %33 : vector<8x128xf32>
    %36 = arith.addf %31, %35 : vector<8x128xf32>
    %c3 = arith.constant 3 : index
    %37 = memref.load %arg2[%c3] : memref<24xf32, #tpu.memory_space<smem>>
    %38 = vector.extract_strided_slice %16 {offsets = [0, 0], sizes = [8, 128], strides = [1, 1]} : vector<8x130xf32> to vector<8x128xf32>
    %39 = vector.broadcast %37 : f32 to vector<8x128xf32>
    %40 = arith.mulf %39, %38 : vector<8x128xf32>
    %41 = arith.addf %36, %40 : vector<8x128xf32>
    %c4 = arith.constant 4 : index
    %42 = memref.load %arg2[%c4] : memref<24xf32, #tpu.memory_space<smem>>
    %43 = vector.extract_strided_slice %16 {offsets = [0, 1], sizes = [8, 128], strides = [1, 1]} : vector<8x130xf32> to vector<8x128xf32>
    %44 = vector.broadcast %42 : f32 to vector<8x128xf32>
    %45 = arith.mulf %44, %43 : vector<8x128xf32>
    %46 = arith.addf %41, %45 : vector<8x128xf32>
    %c5 = arith.constant 5 : index
    %47 = memref.load %arg2[%c5] : memref<24xf32, #tpu.memory_space<smem>>
    %48 = vector.extract_strided_slice %16 {offsets = [0, 2], sizes = [8, 128], strides = [1, 1]} : vector<8x130xf32> to vector<8x128xf32>
    %49 = vector.broadcast %47 : f32 to vector<8x128xf32>
    %50 = arith.mulf %49, %48 : vector<8x128xf32>
    %51 = arith.addf %46, %50 : vector<8x128xf32>
    %c0_11 = arith.constant 0 : index
    %52 = memref.load %arg4[%c0_11] : memref<4xf32, #tpu.memory_space<smem>>
    %53 = vector.broadcast %52 : f32 to vector<8x128xf32>
    %54 = arith.mulf %51, %53 : vector<8x128xf32>
    %c0_12 = arith.constant 0 : index
    %55 = memref.load %arg5[%c0_12] : memref<4xf32, #tpu.memory_space<smem>>
    %56 = vector.broadcast %55 : f32 to vector<8x128xf32>
    %57 = arith.addf %54, %56 : vector<8x128xf32>
    %cst_13 = arith.constant 0.000000e+00 : f32
    %58 = vector.broadcast %cst_13 : f32 to vector<8x128xf32>
    %59 = arith.maximumf %57, %58 : vector<8x128xf32>
    %c0_14 = arith.constant 0 : index
    %c0_15 = arith.constant 0 : index
    %c0_16 = arith.constant 0 : index
    %60 = vector.load %arg8[%c0_14, %c0_15, %c0_16] : memref<4x128x128xf32, #tpu.memory_space<vmem>>, vector<1x128x128xf32>
    %61 = vector.shape_cast %60 : vector<1x128x128xf32> to vector<128x128xf32>
    %cst_17 = arith.constant dense<0.000000e+00> : vector<8x128xf32>
    %62 = tpu.matmul %59, %61, %cst_17 {dimension_numbers = #tpu.dot_dimension_numbers<[1], [0], [0], [1], [0, 0, 1, 1], [], []>} : vector<8x128xf32>, vector<128x128xf32>, vector<8x128xf32> -> vector<8x128xf32>
    %63 = arith.addf %17, %62 : vector<8x128xf32>
    %cst_18 = arith.constant 0.000000e+00 : f32
    %64 = vector.broadcast %cst_18 : f32 to vector<8x128xf32>
    %c1_19 = arith.constant 1 : index
    %65 = memref.load %arg3[%c1_19] : memref<4xf32, #tpu.memory_space<smem>>
    %66 = vector.broadcast %65 : f32 to vector<8x128xf32>
    %67 = arith.addf %64, %66 : vector<8x128xf32>
    %c6 = arith.constant 6 : index
    %68 = memref.load %arg2[%c6] : memref<24xf32, #tpu.memory_space<smem>>
    %69 = vector.extract_strided_slice %15 {offsets = [0, 0], sizes = [8, 128], strides = [1, 1]} : vector<8x130xf32> to vector<8x128xf32>
    %70 = vector.broadcast %68 : f32 to vector<8x128xf32>
    %71 = arith.mulf %70, %69 : vector<8x128xf32>
    %72 = arith.addf %67, %71 : vector<8x128xf32>
    %c7 = arith.constant 7 : index
    %73 = memref.load %arg2[%c7] : memref<24xf32, #tpu.memory_space<smem>>
    %74 = vector.extract_strided_slice %15 {offsets = [0, 1], sizes = [8, 128], strides = [1, 1]} : vector<8x130xf32> to vector<8x128xf32>
    %75 = vector.broadcast %73 : f32 to vector<8x128xf32>
    %76 = arith.mulf %75, %74 : vector<8x128xf32>
    %77 = arith.addf %72, %76 : vector<8x128xf32>
    %c8 = arith.constant 8 : index
    %78 = memref.load %arg2[%c8] : memref<24xf32, #tpu.memory_space<smem>>
    %79 = vector.extract_strided_slice %15 {offsets = [0, 2], sizes = [8, 128], strides = [1, 1]} : vector<8x130xf32> to vector<8x128xf32>
    %80 = vector.broadcast %78 : f32 to vector<8x128xf32>
    %81 = arith.mulf %80, %79 : vector<8x128xf32>
    %82 = arith.addf %77, %81 : vector<8x128xf32>
    %c9 = arith.constant 9 : index
    %83 = memref.load %arg2[%c9] : memref<24xf32, #tpu.memory_space<smem>>
    %84 = vector.extract_strided_slice %16 {offsets = [0, 0], sizes = [8, 128], strides = [1, 1]} : vector<8x130xf32> to vector<8x128xf32>
    %85 = vector.broadcast %83 : f32 to vector<8x128xf32>
    %86 = arith.mulf %85, %84 : vector<8x128xf32>
    %87 = arith.addf %82, %86 : vector<8x128xf32>
    %c10 = arith.constant 10 : index
    %88 = memref.load %arg2[%c10] : memref<24xf32, #tpu.memory_space<smem>>
    %89 = vector.extract_strided_slice %16 {offsets = [0, 1], sizes = [8, 128], strides = [1, 1]} : vector<8x130xf32> to vector<8x128xf32>
    %90 = vector.broadcast %88 : f32 to vector<8x128xf32>
    %91 = arith.mulf %90, %89 : vector<8x128xf32>
    %92 = arith.addf %87, %91 : vector<8x128xf32>
    %c11 = arith.constant 11 : index
    %93 = memref.load %arg2[%c11] : memref<24xf32, #tpu.memory_space<smem>>
    %94 = vector.extract_strided_slice %16 {offsets = [0, 2], sizes = [8, 128], strides = [1, 1]} : vector<8x130xf32> to vector<8x128xf32>
    %95 = vector.broadcast %93 : f32 to vector<8x128xf32>
    %96 = arith.mulf %95, %94 : vector<8x128xf32>
    %97 = arith.addf %92, %96 : vector<8x128xf32>
    %c1_20 = arith.constant 1 : index
    %98 = memref.load %arg4[%c1_20] : memref<4xf32, #tpu.memory_space<smem>>
    %99 = vector.broadcast %98 : f32 to vector<8x128xf32>
    %100 = arith.mulf %97, %99 : vector<8x128xf32>
    %c1_21 = arith.constant 1 : index
    %101 = memref.load %arg5[%c1_21] : memref<4xf32, #tpu.memory_space<smem>>
    %102 = vector.broadcast %101 : f32 to vector<8x128xf32>
    %103 = arith.addf %100, %102 : vector<8x128xf32>
    %cst_22 = arith.constant 0.000000e+00 : f32
    %104 = vector.broadcast %cst_22 : f32 to vector<8x128xf32>
    %105 = arith.maximumf %103, %104 : vector<8x128xf32>
    %c1_23 = arith.constant 1 : index
    %c0_24 = arith.constant 0 : index
    %c0_25 = arith.constant 0 : index
    %106 = vector.load %arg8[%c1_23, %c0_24, %c0_25] : memref<4x128x128xf32, #tpu.memory_space<vmem>>, vector<1x128x128xf32>
    %107 = vector.shape_cast %106 : vector<1x128x128xf32> to vector<128x128xf32>
    %cst_26 = arith.constant dense<0.000000e+00> : vector<8x128xf32>
    %108 = tpu.matmul %105, %107, %cst_26 {dimension_numbers = #tpu.dot_dimension_numbers<[1], [0], [0], [1], [0, 0, 1, 1], [], []>} : vector<8x128xf32>, vector<128x128xf32>, vector<8x128xf32> -> vector<8x128xf32>
    %109 = arith.addf %63, %108 : vector<8x128xf32>
    %cst_27 = arith.constant 0.000000e+00 : f32
    %110 = vector.broadcast %cst_27 : f32 to vector<8x128xf32>
    %c2_28 = arith.constant 2 : index
    %111 = memref.load %arg3[%c2_28] : memref<4xf32, #tpu.memory_space<smem>>
    %112 = vector.broadcast %111 : f32 to vector<8x128xf32>
    %113 = arith.addf %110, %112 : vector<8x128xf32>
    %c12 = arith.constant 12 : index
    %114 = memref.load %arg2[%c12] : memref<24xf32, #tpu.memory_space<smem>>
    %115 = vector.extract_strided_slice %15 {offsets = [0, 0], sizes = [8, 128], strides = [1, 1]} : vector<8x130xf32> to vector<8x128xf32>
    %116 = vector.broadcast %114 : f32 to vector<8x128xf32>
    %117 = arith.mulf %116, %115 : vector<8x128xf32>
    %118 = arith.addf %113, %117 : vector<8x128xf32>
    %c13 = arith.constant 13 : index
    %119 = memref.load %arg2[%c13] : memref<24xf32, #tpu.memory_space<smem>>
    %120 = vector.extract_strided_slice %15 {offsets = [0, 1], sizes = [8, 128], strides = [1, 1]} : vector<8x130xf32> to vector<8x128xf32>
    %121 = vector.broadcast %119 : f32 to vector<8x128xf32>
    %122 = arith.mulf %121, %120 : vector<8x128xf32>
    %123 = arith.addf %118, %122 : vector<8x128xf32>
    %c14 = arith.constant 14 : index
    %124 = memref.load %arg2[%c14] : memref<24xf32, #tpu.memory_space<smem>>
    %125 = vector.extract_strided_slice %15 {offsets = [0, 2], sizes = [8, 128], strides = [1, 1]} : vector<8x130xf32> to vector<8x128xf32>
    %126 = vector.broadcast %124 : f32 to vector<8x128xf32>
    %127 = arith.mulf %126, %125 : vector<8x128xf32>
    %128 = arith.addf %123, %127 : vector<8x128xf32>
    %c15 = arith.constant 15 : index
    %129 = memref.load %arg2[%c15] : memref<24xf32, #tpu.memory_space<smem>>
    %130 = vector.extract_strided_slice %16 {offsets = [0, 0], sizes = [8, 128], strides = [1, 1]} : vector<8x130xf32> to vector<8x128xf32>
    %131 = vector.broadcast %129 : f32 to vector<8x128xf32>
    %132 = arith.mulf %131, %130 : vector<8x128xf32>
    %133 = arith.addf %128, %132 : vector<8x128xf32>
    %c16 = arith.constant 16 : index
    %134 = memref.load %arg2[%c16] : memref<24xf32, #tpu.memory_space<smem>>
    %135 = vector.extract_strided_slice %16 {offsets = [0, 1], sizes = [8, 128], strides = [1, 1]} : vector<8x130xf32> to vector<8x128xf32>
    %136 = vector.broadcast %134 : f32 to vector<8x128xf32>
    %137 = arith.mulf %136, %135 : vector<8x128xf32>
    %138 = arith.addf %133, %137 : vector<8x128xf32>
    %c17 = arith.constant 17 : index
    %139 = memref.load %arg2[%c17] : memref<24xf32, #tpu.memory_space<smem>>
    %140 = vector.extract_strided_slice %16 {offsets = [0, 2], sizes = [8, 128], strides = [1, 1]} : vector<8x130xf32> to vector<8x128xf32>
    %141 = vector.broadcast %139 : f32 to vector<8x128xf32>
    %142 = arith.mulf %141, %140 : vector<8x128xf32>
    %143 = arith.addf %138, %142 : vector<8x128xf32>
    %c2_29 = arith.constant 2 : index
    %144 = memref.load %arg4[%c2_29] : memref<4xf32, #tpu.memory_space<smem>>
    %145 = vector.broadcast %144 : f32 to vector<8x128xf32>
    %146 = arith.mulf %143, %145 : vector<8x128xf32>
    %c2_30 = arith.constant 2 : index
    %147 = memref.load %arg5[%c2_30] : memref<4xf32, #tpu.memory_space<smem>>
    %148 = vector.broadcast %147 : f32 to vector<8x128xf32>
    %149 = arith.addf %146, %148 : vector<8x128xf32>
    %cst_31 = arith.constant 0.000000e+00 : f32
    %150 = vector.broadcast %cst_31 : f32 to vector<8x128xf32>
    %151 = arith.maximumf %149, %150 : vector<8x128xf32>
    %c2_32 = arith.constant 2 : index
    %c0_33 = arith.constant 0 : index
    %c0_34 = arith.constant 0 : index
    %152 = vector.load %arg8[%c2_32, %c0_33, %c0_34] : memref<4x128x128xf32, #tpu.memory_space<vmem>>, vector<1x128x128xf32>
    %153 = vector.shape_cast %152 : vector<1x128x128xf32> to vector<128x128xf32>
    %cst_35 = arith.constant dense<0.000000e+00> : vector<8x128xf32>
    %154 = tpu.matmul %151, %153, %cst_35 {dimension_numbers = #tpu.dot_dimension_numbers<[1], [0], [0], [1], [0, 0, 1, 1], [], []>} : vector<8x128xf32>, vector<128x128xf32>, vector<8x128xf32> -> vector<8x128xf32>
    %155 = arith.addf %109, %154 : vector<8x128xf32>
    %cst_36 = arith.constant 0.000000e+00 : f32
    %156 = vector.broadcast %cst_36 : f32 to vector<8x128xf32>
    %c3_37 = arith.constant 3 : index
    %157 = memref.load %arg3[%c3_37] : memref<4xf32, #tpu.memory_space<smem>>
    %158 = vector.broadcast %157 : f32 to vector<8x128xf32>
    %159 = arith.addf %156, %158 : vector<8x128xf32>
    %c18 = arith.constant 18 : index
    %160 = memref.load %arg2[%c18] : memref<24xf32, #tpu.memory_space<smem>>
    %161 = vector.extract_strided_slice %15 {offsets = [0, 0], sizes = [8, 128], strides = [1, 1]} : vector<8x130xf32> to vector<8x128xf32>
    %162 = vector.broadcast %160 : f32 to vector<8x128xf32>
    %163 = arith.mulf %162, %161 : vector<8x128xf32>
    %164 = arith.addf %159, %163 : vector<8x128xf32>
    %c19 = arith.constant 19 : index
    %165 = memref.load %arg2[%c19] : memref<24xf32, #tpu.memory_space<smem>>
    %166 = vector.extract_strided_slice %15 {offsets = [0, 1], sizes = [8, 128], strides = [1, 1]} : vector<8x130xf32> to vector<8x128xf32>
    %167 = vector.broadcast %165 : f32 to vector<8x128xf32>
    %168 = arith.mulf %167, %166 : vector<8x128xf32>
    %169 = arith.addf %164, %168 : vector<8x128xf32>
    %c20 = arith.constant 20 : index
    %170 = memref.load %arg2[%c20] : memref<24xf32, #tpu.memory_space<smem>>
    %171 = vector.extract_strided_slice %15 {offsets = [0, 2], sizes = [8, 128], strides = [1, 1]} : vector<8x130xf32> to vector<8x128xf32>
    %172 = vector.broadcast %170 : f32 to vector<8x128xf32>
    %173 = arith.mulf %172, %171 : vector<8x128xf32>
    %174 = arith.addf %169, %173 : vector<8x128xf32>
    %c21 = arith.constant 21 : index
    %175 = memref.load %arg2[%c21] : memref<24xf32, #tpu.memory_space<smem>>
    %176 = vector.extract_strided_slice %16 {offsets = [0, 0], sizes = [8, 128], strides = [1, 1]} : vector<8x130xf32> to vector<8x128xf32>
    %177 = vector.broadcast %175 : f32 to vector<8x128xf32>
    %178 = arith.mulf %177, %176 : vector<8x128xf32>
    %179 = arith.addf %174, %178 : vector<8x128xf32>
    %c22 = arith.constant 22 : index
    %180 = memref.load %arg2[%c22] : memref<24xf32, #tpu.memory_space<smem>>
    %181 = vector.extract_strided_slice %16 {offsets = [0, 1], sizes = [8, 128], strides = [1, 1]} : vector<8x130xf32> to vector<8x128xf32>
    %182 = vector.broadcast %180 : f32 to vector<8x128xf32>
    %183 = arith.mulf %182, %181 : vector<8x128xf32>
    %184 = arith.addf %179, %183 : vector<8x128xf32>
    %c23 = arith.constant 23 : index
    %185 = memref.load %arg2[%c23] : memref<24xf32, #tpu.memory_space<smem>>
    %186 = vector.extract_strided_slice %16 {offsets = [0, 2], sizes = [8, 128], strides = [1, 1]} : vector<8x130xf32> to vector<8x128xf32>
    %187 = vector.broadcast %185 : f32 to vector<8x128xf32>
    %188 = arith.mulf %187, %186 : vector<8x128xf32>
    %189 = arith.addf %184, %188 : vector<8x128xf32>
    %c3_38 = arith.constant 3 : index
    %190 = memref.load %arg4[%c3_38] : memref<4xf32, #tpu.memory_space<smem>>
    %191 = vector.broadcast %190 : f32 to vector<8x128xf32>
    %192 = arith.mulf %189, %191 : vector<8x128xf32>
    %c3_39 = arith.constant 3 : index
    %193 = memref.load %arg5[%c3_39] : memref<4xf32, #tpu.memory_space<smem>>
    %194 = vector.broadcast %193 : f32 to vector<8x128xf32>
    %195 = arith.addf %192, %194 : vector<8x128xf32>
    %cst_40 = arith.constant 0.000000e+00 : f32
    %196 = vector.broadcast %cst_40 : f32 to vector<8x128xf32>
    %197 = arith.maximumf %195, %196 : vector<8x128xf32>
    %c3_41 = arith.constant 3 : index
    %c0_42 = arith.constant 0 : index
    %c0_43 = arith.constant 0 : index
    %198 = vector.load %arg8[%c3_41, %c0_42, %c0_43] : memref<4x128x128xf32, #tpu.memory_space<vmem>>, vector<1x128x128xf32>
    %199 = vector.shape_cast %198 : vector<1x128x128xf32> to vector<128x128xf32>
    %cst_44 = arith.constant dense<0.000000e+00> : vector<8x128xf32>
    %200 = tpu.matmul %197, %199, %cst_44 {dimension_numbers = #tpu.dot_dimension_numbers<[1], [0], [0], [1], [0, 0, 1, 1], [], []>} : vector<8x128xf32>, vector<128x128xf32>, vector<8x128xf32> -> vector<8x128xf32>
    %201 = arith.addf %155, %200 : vector<8x128xf32>
    %c0_45 = arith.constant 0 : index
    %c0_46 = arith.constant 0 : index
    %202 = vector.load %arg9[%c0_45, %c0_46] : memref<1x128xf32, #tpu.memory_space<vmem>>, vector<1x128xf32>
    %203 = vector.broadcast %202 : vector<1x128xf32> to vector<8x128xf32>
    %204 = arith.addf %201, %203 : vector<8x128xf32>
    %c0_47 = arith.constant 0 : index
    %c0_48 = arith.constant 0 : index
    %205 = vector.load %arg10[%c0_47, %c0_48] : memref<1x128xf32, #tpu.memory_space<vmem>>, vector<1x128xf32>
    %206 = vector.broadcast %205 : vector<1x128xf32> to vector<8x128xf32>
    %207 = arith.mulf %204, %206 : vector<8x128xf32>
    %c0_49 = arith.constant 0 : index
    %c0_50 = arith.constant 0 : index
    %208 = vector.load %arg11[%c0_49, %c0_50] : memref<1x128xf32, #tpu.memory_space<vmem>>, vector<1x128xf32>
    %209 = vector.broadcast %208 : vector<1x128xf32> to vector<8x128xf32>
    %210 = arith.addf %207, %209 : vector<8x128xf32>
    %cst_51 = arith.constant 0.000000e+00 : f32
    %211 = vector.broadcast %cst_51 : f32 to vector<8x128xf32>
    %212 = arith.maximumf %210, %211 : vector<8x128xf32>
    %213 = arith.truncf %212 : vector<8x128xf32> to vector<8x128xbf16>
    %c0_52 = arith.constant 0 : index
    %c0_53 = arith.constant 0 : index
    %214 = vector.load %arg12[%c0_52, %c0_53] : memref<8x128xbf16, #tpu.memory_space<vmem>>, vector<8x128xbf16>
    tpu.vector_store %arg12[%c0_52, %c0_53], %213 {strides = array<i32>} : memref<8x128xbf16, #tpu.memory_space<vmem>>, vector<8x128xbf16>,
    return
  }
}

</mosaic_0001>

<llo_original>
// kernel: tpu_custom_call.1
$region0: #{tpu_custom_call.1}
  #allocation0 [shape = 'u32[]', space=smem, size = 0x4, offset = 0x4, fixed_abs, tag = 'smem constant byte address 0x4 - core index']
  #allocation1 [shape = 'u32[144,128]{1,0:T(1,128)}', space=vmem, size = 0x12000, scoped, tag = 'internal scratch']
  %s0 = inlined_call_operand.hbm [shape: f32[8,128], index: 0, kind: input, shape index: {}]
  %s1 = inlined_call_operand.hbm [shape: f32[8,128], index: 1, kind: output, shape index: {}]
  %s2 = sld [smem:[#allocation0]]
  $region18: #{tpu_custom_call.1} parent=0
    _
  %s4 = ssub.s32 1, %s2
  %s5 = scalar_select 0, %s4, %s2
  $region1: #{tpu_custom_call.1} parent=0
    #allocation2 [shape = 'u8[4096]{0}', space=vmem, size = 0x1000, scoped, tag = 'input window, operand 0, single buffered']
    #allocation3 [shape = 's32[1]{0}', space=sflag, size = 0x4, scoped, tag = 'scoped memory for tpu_custom_call.1']
    #allocation4 [shape = 's32[1]{0}', space=sflag, size = 0x4, scoped, tag = 'scoped memory for tpu_custom_call.1']
    #allocation5 [shape = 'u8[4096]{0}', space=vmem, size = 0x1000, scoped, tag = 'output window, operand 0, single buffered']
    %6 = vsyncpa [#allocation3], 0
    %7 = vsyncpa [#allocation4], 0
    // Predicated region
    $region2: #{tpu_custom_call.1} parent=1 // pred_check
      _
    $region3: #{tpu_custom_call.1} parent=1 // pred_check_branch
      %9 = sbr.rel (0) target = $region5
    $region4: #{tpu_custom_call.1} parent=1 // pred_region
      %s11 = ssub.s32 128, 128
      %12 = vsyncadd [#allocation3], %s11
      %s14 = sshll.u32 [#allocation2], 4
      %s15 = int_to_ptr.vmem [resolvable:$true] %s14
      %17 = dma.hbm_to_vmem [thread:$0]  %s0, 128, %s15, [#allocation3]
    $region5: #{tpu_custom_call.1} parent=1 // pred_fallthru
      _
    // Predicated region
    $region6: #{tpu_custom_call.1} parent=1 // pred_check
      _
    $region7: #{tpu_custom_call.1} parent=1 // pred_check_branch
      %19 = sbr.rel (0) target = $region9
    $region8: #{tpu_custom_call.1} parent=1 // pred_region
      %20 = dma.done [#allocation3], 128
    $region9: #{tpu_custom_call.1} parent=1 // pred_fallthru
      _
    %v21 = vld [vmem:[#allocation2] sm:$0xff]
    %22 = vrot.lane.b32.xlu0 %v21, 1
    %v23 = vpop.permute.xlu0 %22
    %24 = vst [vmem:[#allocation5] sm:$0xff] %v23
    // Predicated region
    $region10: #{tpu_custom_call.1} parent=1 // pred_check
      _
    $region11: #{tpu_custom_call.1} parent=1 // pred_check_branch
      %26 = sbr.rel (0) target = $region13
    $region12: #{tpu_custom_call.1} parent=1 // pred_region
      %s28 = ssub.s32 128, 128
      %29 = vsyncadd [#allocation4], %s28
      %s31 = sshll.u32 [#allocation5], 4
      %s32 = int_to_ptr.vmem [resolvable:$true] %s31
      %34 = dma.vmem_to_hbm [thread:$0]  %s32, 128, %s1, [#allocation4]
    $region13: #{tpu_custom_call.1} parent=1 // pred_fallthru
      _
    // Predicated region
    $region14: #{tpu_custom_call.1} parent=1 // pred_check
      _
    $region15: #{tpu_custom_call.1} parent=1 // pred_check_branch
      %36 = sbr.rel (0) target = $region17
    $region16: #{tpu_custom_call.1} parent=1 // pred_region
      %37 = dma.done [#allocation4], 128
    $region17: #{tpu_custom_call.1} parent=1 // pred_fallthru
      _
    %38 = vsyncpa [#allocation3], 1
    %39 = vsyncpa [#allocation4], 1

// kernel: tpu_custom_call.1
$region0: #{tpu_custom_call.1}
  #allocation0 [shape = 'u32[]', space=smem, size = 0x4, offset = 0x4, fixed_abs, tag = 'smem constant byte address 0x4 - core index']
  #allocation1 [shape = 'u32[144,128]{1,0:T(1,128)}', space=vmem, size = 0x12000, scoped, tag = 'internal scratch']
  %s0 = inlined_call_operand.hbm [shape: f32[2], index: 0, kind: input, shape index: {}]
  %s1 = inlined_call_operand.vmem [shape: f32[2], index: 1, kind: input, shape index: {}]
  %s2 = inlined_call_operand.vmem [shape: f32[24], index: 2, kind: input, shape index: {}]
  %s3 = inlined_call_operand.hbm [shape: f32[4], index: 3, kind: input, shape index: {}]
  %s4 = inlined_call_operand.hbm [shape: f32[4], index: 4, kind: input, shape index: {}]
  %s5 = inlined_call_operand.hbm [shape: f32[4], index: 5, kind: input, shape index: {}]
  %s6 = inlined_call_operand.vmem [shape: f32[8,128], index: 6, kind: input, shape index: {}]
  %s7 = inlined_call_operand.hbm [shape: f32[8,128], index: 7, kind: input, shape index: {}]
  %s8 = inlined_call_operand.hbm [shape: f32[4,128,128], index: 8, kind: input, shape index: {}]
  %s9 = inlined_call_operand.vmem [shape: f32[1,128], index: 9, kind: input, shape index: {}]
  %s10 = inlined_call_operand.vmem [shape: f32[1,128], index: 10, kind: input, shape index: {}]
  %s11 = inlined_call_operand.vmem [shape: f32[1,128], index: 11, kind: input, shape index: {}]
  %s12 = inlined_call_operand.hbm [shape: bf16[8,128], index: 12, kind: output, shape index: {}]
  %s13 = sld [smem:[#allocation0]]
  $region90: #{tpu_custom_call.1} parent=0
    _
  %s15 = ssub.s32 1, %s13
  %s16 = scalar_select 0, %s15, %s13
  $region1: #{tpu_custom_call.1} parent=0
    #allocation2 [shape = 'u8[512]{0}', space=smem, size = 0x200, scoped, tag = 'input window, operand 0, single buffered']
    #allocation3 [shape = 's32[1]{0}', space=sflag, size = 0x4, scoped, tag = 'scoped memory for tpu_custom_call.1']
    #allocation4 [shape = 's32[1]{0}', space=sflag, size = 0x4, scoped, tag = 'scoped memory for tpu_custom_call.1']
    #allocation5 [shape = 's32[1]{0}', space=sflag, size = 0x4, scoped, tag = 'scoped memory for tpu_custom_call.1']
    #allocation6 [shape = 's32[1]{0}', space=sflag, size = 0x4, scoped, tag = 'scoped memory for tpu_custom_call.1']
    #allocation7 [shape = 'u8[512]{0}', space=smem, size = 0x200, scoped, tag = 'input window, operand 1, single buffered']
    #allocation8 [shape = 'u8[512]{0}', space=smem, size = 0x200, scoped, tag = 'input window, operand 2, single buffered']
    #allocation9 [shape = 's32[1]{0}', space=sflag, size = 0x4, scoped, tag = 'scoped memory for tpu_custom_call.1']
    #allocation10 [shape = 'u8[512]{0}', space=smem, size = 0x200, scoped, tag = 'input window, operand 3, single buffered']
    #allocation11 [shape = 's32[1]{0}', space=sflag, size = 0x4, scoped, tag = 'scoped memory for tpu_custom_call.1']
    #allocation12 [shape = 'u8[512]{0}', space=smem, size = 0x200, scoped, tag = 'input window, operand 4, single buffered']
    #allocation13 [shape = 'u8[512]{0}', space=smem, size = 0x200, scoped, tag = 'input window, operand 5, single buffered']
    #allocation14 [shape = 's32[1]{0}', space=sflag, size = 0x4, scoped, tag = 'scoped memory for tpu_custom_call.1']
    #allocation15 [shape = 'u8[4096]{0}', space=vmem, size = 0x1000, scoped, tag = 'input window, operand 7, single buffered']
    #allocation16 [shape = 'u8[262144]{0}', space=vmem, size = 0x40000, scoped, tag = 'input window, operand 8, single buffered']
    #allocation17 [shape = 's32[1]{0}', space=sflag, size = 0x4, scoped, tag = 'scoped memory for tpu_custom_call.1']
    #allocation18 [shape = 'u8[2048]{0}', space=vmem, size = 0x800, scoped, tag = 'output window, operand 0, single buffered']
    %17 = vsyncpa [#allocation5], 0
    %18 = vsyncpa [#allocation6], 0
    %19 = vsyncpa [#allocation9], 0
    %20 = vsyncpa [#allocation11], 0
    %21 = vsyncpa [#allocation14], 0
    %22 = vsyncpa [#allocation3], 0
    %23 = vsyncpa [#allocation17], 0
    %24 = vsyncpa [#allocation4], 0
    // Predicated region
    $region2: #{tpu_custom_call.1} parent=1 // pred_check
      _
    $region3: #{tpu_custom_call.1} parent=1 // pred_check_branch
      %26 = sbr.rel (0) target = $region5
    $region4: #{tpu_custom_call.1} parent=1 // pred_region
      %s28 = ssub.s32 16, 16
      %29 = vsyncadd [#allocation5], %s28
      %32 = dma.hbm_to_smem %s0, 16, [#allocation2], [#allocation5]
    $region5: #{tpu_custom_call.1} parent=1 // pred_fallthru
      _
    // Predicated region
    $region6: #{tpu_custom_call.1} parent=1 // pred_check
      _
    $region7: #{tpu_custom_call.1} parent=1 // pred_check_branch
      %34 = sbr.rel (0) target = $region9
    $region8: #{tpu_custom_call.1} parent=1 // pred_region
      %s36 = ssub.s32 16, 16
      %37 = vsyncadd [#allocation6], %s36
      %s39 = sshll.u32 %s1, 4
      %s40 = int_to_ptr.vmem [resolvable:$true] %s39
      %42 = dma.vmem_to_smem %s40, 16, [#allocation7], [#allocation6]
    $region9: #{tpu_custom_call.1} parent=1 // pred_fallthru
      _
    // Predicated region
    $region10: #{tpu_custom_call.1} parent=1 // pred_check
      _
    $region11: #{tpu_custom_call.1} parent=1 // pred_check_branch
      %44 = sbr.rel (0) target = $region13
    $region12: #{tpu_custom_call.1} parent=1 // pred_region
      %s46 = ssub.s32 16, 16
      %47 = vsyncadd [#allocation9], %s46
      %s49 = sshll.u32 %s2, 4
      %s50 = int_to_ptr.vmem [resolvable:$true] %s49
      %52 = dma.vmem_to_smem %s50, 16, [#allocation8], [#allocation9]
    $region13: #{tpu_custom_call.1} parent=1 // pred_fallthru
      _
    // Predicated region
    $region14: #{tpu_custom_call.1} parent=1 // pred_check
      _
    $region15: #{tpu_custom_call.1} parent=1 // pred_check_branch
      %54 = sbr.rel (0) target = $region17
    $region16: #{tpu_custom_call.1} parent=1 // pred_region
      %s56 = ssub.s32 16, 16
      %57 = vsyncadd [#allocation11], %s56
      %60 = dma.hbm_to_smem %s3, 16, [#allocation10], [#allocation11]
    $region17: #{tpu_custom_call.1} parent=1 // pred_fallthru
      _
    // Predicated region
    $region18: #{tpu_custom_call.1} parent=1 // pred_check
      _
    $region19: #{tpu_custom_call.1} parent=1 // pred_check_branch
      %62 = sbr.rel (0) target = $region21
    $region20: #{tpu_custom_call.1} parent=1 // pred_region
      %s64 = ssub.s32 16, 16
      %65 = vsyncadd [#allocation11], %s64
      %68 = dma.hbm_to_smem %s4, 16, [#allocation12], [#allocation11]
    $region21: #{tpu_custom_call.1} parent=1 // pred_fallthru
      _
    // Predicated region
    $region22: #{tpu_custom_call.1} parent=1 // pred_check
      _
    $region23: #{tpu_custom_call.1} parent=1 // pred_check_branch
      %70 = sbr.rel (0) target = $region25
    $region24: #{tpu_custom_call.1} parent=1 // pred_region
      %s72 = ssub.s32 16, 16
      %73 = vsyncadd [#allocation14], %s72
      %76 = dma.hbm_to_smem %s5, 16, [#allocation13], [#allocation14]
    $region25: #{tpu_custom_call.1} parent=1 // pred_fallthru
      _
    // Predicated region
    $region26: #{tpu_custom_call.1} parent=1 // pred_check
      _
    $region27: #{tpu_custom_call.1} parent=1 // pred_check_branch
      %78 = sbr.rel (0) target = $region29
    $region28: #{tpu_custom_call.1} parent=1 // pred_region
      _
    $region29: #{tpu_custom_call.1} parent=1 // pred_fallthru
      _
    // Predicated region
    $region30: #{tpu_custom_call.1} parent=1 // pred_check
      _
    $region31: #{tpu_custom_call.1} parent=1 // pred_check_branch
      %80 = sbr.rel (0) target = $region33
    $region32: #{tpu_custom_call.1} parent=1 // pred_region
      %s82 = ssub.s32 128, 128
      %83 = vsyncadd [#allocation3], %s82
      %s85 = sshll.u32 [#allocation15], 4
      %s86 = int_to_ptr.vmem [resolvable:$true] %s85
      %88 = dma.hbm_to_vmem [thread:$0]  %s7, 128, %s86, [#allocation3]
    $region33: #{tpu_custom_call.1} parent=1 // pred_fallthru
      _
    // Predicated region
    $region34: #{tpu_custom_call.1} parent=1 // pred_check
      _
    $region35: #{tpu_custom_call.1} parent=1 // pred_check_branch
      %90 = sbr.rel (0) target = $region37
    $region36: #{tpu_custom_call.1} parent=1 // pred_region
      %s92 = ssub.s32 8192, 8192
      %93 = vsyncadd [#allocation17], %s92
      %s94 = sshll.u32 [#allocation16], 4
      %s95 = int_to_ptr.vmem [resolvable:$true] %s94
      %100 = dma.hbm_to_vmem [thread:$0]  %s8, 8192, %s95, [#allocation17], 128, 128, 8
    $region37: #{tpu_custom_call.1} parent=1 // pred_fallthru
      _
    // Predicated region
    $region38: #{tpu_custom_call.1} parent=1 // pred_check
      _
    $region39: #{tpu_custom_call.1} parent=1 // pred_check_branch
      %102 = sbr.rel (0) target = $region41
    $region40: #{tpu_custom_call.1} parent=1 // pred_region
      _
    $region41: #{tpu_custom_call.1} parent=1 // pred_fallthru
      _
    // Predicated region
    $region42: #{tpu_custom_call.1} parent=1 // pred_check
      _
    $region43: #{tpu_custom_call.1} parent=1 // pred_check_branch
      %104 = sbr.rel (0) target = $region45
    $region44: #{tpu_custom_call.1} parent=1 // pred_region
      _
    $region45: #{tpu_custom_call.1} parent=1 // pred_fallthru
      _
    // Predicated region
    $region46: #{tpu_custom_call.1} parent=1 // pred_check
      _
    $region47: #{tpu_custom_call.1} parent=1 // pred_check_branch
      %106 = sbr.rel (0) target = $region49
    $region48: #{tpu_custom_call.1} parent=1 // pred_region
      _
    $region49: #{tpu_custom_call.1} parent=1 // pred_fallthru
      _
    // Predicated region
    $region50: #{tpu_custom_call.1} parent=1 // pred_check
      _
    $region51: #{tpu_custom_call.1} parent=1 // pred_check_branch
      %108 = sbr.rel (0) target = $region53
    $region52: #{tpu_custom_call.1} parent=1 // pred_region
      %109 = dma.done [#allocation5], 16
    $region53: #{tpu_custom_call.1} parent=1 // pred_fallthru
      _
    // Predicated region
    $region54: #{tpu_custom_call.1} parent=1 // pred_check
      _
    $region55: #{tpu_custom_call.1} parent=1 // pred_check_branch
      %111 = sbr.rel (0) target = $region57
    $region56: #{tpu_custom_call.1} parent=1 // pred_region
      %112 = dma.done [#allocation6], 16
    $region57: #{tpu_custom_call.1} parent=1 // pred_fallthru
      _
    // Predicated region
    $region58: #{tpu_custom_call.1} parent=1 // pred_check
      _
    $region59: #{tpu_custom_call.1} parent=1 // pred_check_branch
      %114 = sbr.rel (0) target = $region61
    $region60: #{tpu_custom_call.1} parent=1 // pred_region
      %115 = dma.done [#allocation9], 16
    $region61: #{tpu_custom_call.1} parent=1 // pred_fallthru
      _
    // Predicated region
    $region62: #{tpu_custom_call.1} parent=1 // pred_check
      _
    $region63: #{tpu_custom_call.1} parent=1 // pred_check_branch
      %117 = sbr.rel (0) target = $region65
    $region64: #{tpu_custom_call.1} parent=1 // pred_region
      %118 = dma.done [#allocation11], 16
    $region65: #{tpu_custom_call.1} parent=1 // pred_fallthru
      _
    // Predicated region
    $region66: #{tpu_custom_call.1} parent=1 // pred_check
      _
    $region67: #{tpu_custom_call.1} parent=1 // pred_check_branch
      %120 = sbr.rel (0) target = $region69
    $region68: #{tpu_custom_call.1} parent=1 // pred_region
      %121 = dma.done [#allocation11], 16
    $region69: #{tpu_custom_call.1} parent=1 // pred_fallthru
      _
    // Predicated region
    $region70: #{tpu_custom_call.1} parent=1 // pred_check
      _
    $region71: #{tpu_custom_call.1} parent=1 // pred_check_branch
      %123 = sbr.rel (0) target = $region73
    $region72: #{tpu_custom_call.1} parent=1 // pred_region
      %124 = dma.done [#allocation14], 16
    $region73: #{tpu_custom_call.1} parent=1 // pred_fallthru
      _
    // Predicated region
    $region74: #{tpu_custom_call.1} parent=1 // pred_check
      _
    $region75: #{tpu_custom_call.1} parent=1 // pred_check_branch
      %126 = sbr.rel (0) target = $region77
    $region76: #{tpu_custom_call.1} parent=1 // pred_region
      %127 = dma.done [#allocation3], 128
    $region77: #{tpu_custom_call.1} parent=1 // pred_fallthru
      _
    // Predicated region
    $region78: #{tpu_custom_call.1} parent=1 // pred_check
      _
    $region79: #{tpu_custom_call.1} parent=1 // pred_check_branch
      %129 = sbr.rel (0) target = $region81
    $region80: #{tpu_custom_call.1} parent=1 // pred_region
      %130 = dma.done [#allocation17], 8192
    $region81: #{tpu_custom_call.1} parent=1 // pred_fallthru
      _
    %131 = sfence
    %v132 = vld [vmem:[%s6] sm:$0xff]
    %s133 = sld [smem:[#allocation2]]
    %v134 = vstv %s133
    %v135 = vmul.f32 %v132, %v134
    %s136 = sld [smem:[#allocation7]]
    %v137 = vstv %s136
    %v138 = vadd.f32 %v135, %v137
    %v139 = vld [vmem:[#allocation15] sm:$0xff]
    %s140 = sld [smem:[#allocation2 + $0x1]]
    %v141 = vstv %s140
    %v142 = vmul.f32 %v139, %v141
    %s143 = sld [smem:[#allocation7 + $0x1]]
    %v144 = vstv %s143
    %v145 = vadd.f32 %v142, %v144
    %147 = vrot.lane.b32.xlu0 %v138, 1
    %v148 = vpop.permute.xlu0 %147
    %vm150 = vcmask 7168
    %v151 = vsel %vm150, 0.0, %v148
    %v152 = vsel %vm150, %v148, 0.0
    %154 = vrot.lane.b32.xlu0 %v145, 1
    %v155 = vpop.permute.xlu0 %154
    %v157 = vsel %vm150, 0.0, %v155
    %v158 = vsel %vm150, %v155, 0.0
    %s159 = sld [smem:[#allocation10]]
    %v160 = vstv %s159
    %v161 = vadd.f32 %v160, 0.0
    %s162 = sld [smem:[#allocation8]]
    %v163 = vstv %s162
    %v164 = vmul.f32 %v163, %v151
    %v165 = vadd.f32 %v161, %v164
    %s166 = sld [smem:[#allocation8 + $0x1]]
    %v167 = vstv %s166
    %v168 = vmul.f32 %v167, %v151
    %v169 = vmul.f32 %v167, %v152
    %172 = vrot.lane.b32.xlu0 %v168, 127
    %v173 = vpop.permute.xlu0 %172
    %174 = vrot.lane.b32.xlu0 %v169, 127
    %v175 = vpop.permute.xlu0 %174
    %vm176 = vcmask 1039360
    %v177 = vsel %vm176, %v173, %v175
    %v179 = vadd.f32 %v165, %v177
    %s180 = sld [smem:[#allocation8 + $0x2]]
    %v181 = vstv %s180
    %v182 = vmul.f32 %v181, %v151
    %v183 = vmul.f32 %v181, %v152
    %186 = vrot.lane.b32.xlu0 %v182, 126
    %v187 = vpop.permute.xlu0 %186
    %188 = vrot.lane.b32.xlu0 %v183, 126
    %v189 = vpop.permute.xlu0 %188
    %vm190 = vcmask 1031168
    %v191 = vsel %vm190, %v187, %v189
    %v193 = vadd.f32 %v179, %v191
    %s194 = sld [smem:[#allocation8 + $0x3]]
    %v195 = vstv %s194
    %v196 = vmul.f32 %v195, %v157
    %v197 = vadd.f32 %v193, %v196
    %s198 = sld [smem:[#allocation8 + $0x4]]
    %v199 = vstv %s198
    %v200 = vmul.f32 %v199, %v157
    %v201 = vmul.f32 %v199, %v158
    %204 = vrot.lane.b32.xlu0 %v200, 127
    %v205 = vpop.permute.xlu0 %204
    %206 = vrot.lane.b32.xlu0 %v201, 127
    %v207 = vpop.permute.xlu0 %206
    %v208 = vsel %vm176, %v205, %v207
    %v210 = vadd.f32 %v197, %v208
    %s211 = sld [smem:[#allocation8 + $0x5]]
    %v212 = vstv %s211
    %v213 = vmul.f32 %v212, %v157
    %v214 = vmul.f32 %v212, %v158
    %217 = vrot.lane.b32.xlu0 %v213, 126
    %v218 = vpop.permute.xlu0 %217
    %219 = vrot.lane.b32.xlu0 %v214, 126
    %v220 = vpop.permute.xlu0 %219
    %v221 = vsel %vm190, %v218, %v220
    %v223 = vadd.f32 %v210, %v221
    %s224 = sld [smem:[#allocation12]]
    %v225 = vstv %s224
    %v226 = vmul.f32 %v223, %v225
    %s227 = sld [smem:[#allocation13]]
    %v228 = vstv %s227
    %v229 = vadd.f32 %v226, %v228
    %v230 = vmax.f32 %v229, 0.0
    %v231 = vld [vmem:[#allocation16] sm:$0xff]
    %v232 = vld [vmem:[#allocation16 + $0x8] sm:$0xff]
    %v233 = vld [vmem:[#allocation16 + $0x10] sm:$0xff]
    %v234 = vld [vmem:[#allocation16 + $0x18] sm:$0xff]
    %v235 = vld [vmem:[#allocation16 + $0x20] sm:$0xff]
    %v236 = vld [vmem:[#allocation16 + $0x28] sm:$0xff]
    %v237 = vld [vmem:[#allocation16 + $0x30] sm:$0xff]
    %v238 = vld [vmem:[#allocation16 + $0x38] sm:$0xff]
    %v239 = vld [vmem:[#allocation16 + $0x40] sm:$0xff]
    %v240 = vld [vmem:[#allocation16 + $0x48] sm:$0xff]
    %v241 = vld [vmem:[#allocation16 + $0x50] sm:$0xff]
    %v242 = vld [vmem:[#allocation16 + $0x58] sm:$0xff]
    %v243 = vld [vmem:[#allocation16 + $0x60] sm:$0xff]
    %v244 = vld [vmem:[#allocation16 + $0x68] sm:$0xff]
    %v245 = vld [vmem:[#allocation16 + $0x70] sm:$0xff]
    %v246 = vld [vmem:[#allocation16 + $0x78] sm:$0xff]
    %s247 = sld [smem:[#allocation10 + $0x1]]
    %v248 = vstv %s247
    %v249 = vadd.f32 %v248, 0.0
    %s250 = sld [smem:[#allocation8 + $0x6]]
    %v251 = vstv %s250
    %v252 = vmul.f32 %v251, %v151
    %v253 = vadd.f32 %v249, %v252
    %s254 = sld [smem:[#allocation8 + $0x7]]
    %v255 = vstv %s254
    %v256 = vmul.f32 %v255, %v151
    %v257 = vmul.f32 %v255, %v152
    %260 = vrot.lane.b32.xlu0 %v256, 127
    %v261 = vpop.permute.xlu0 %260
    %262 = vrot.lane.b32.xlu0 %v257, 127
    %v263 = vpop.permute.xlu0 %262
    %v264 = vsel %vm176, %v261, %v263
    %v266 = vadd.f32 %v253, %v264
    %s267 = sld [smem:[#allocation8 + $0x8]]
    %v268 = vstv %s267
    %v269 = vmul.f32 %v268, %v151
    %v270 = vmul.f32 %v268, %v152
    %273 = vrot.lane.b32.xlu0 %v269, 126
    %v274 = vpop.permute.xlu0 %273
    %275 = vrot.lane.b32.xlu0 %v270, 126
    %v276 = vpop.permute.xlu0 %275
    %v277 = vsel %vm190, %v274, %v276
    %v279 = vadd.f32 %v266, %v277
    %s280 = sld [smem:[#allocation8 + $0x9]]
    %v281 = vstv %s280
    %v282 = vmul.f32 %v281, %v157
    %v283 = vadd.f32 %v279, %v282
    %s284 = sld [smem:[#allocation8 + $0xa]]
    %v285 = vstv %s284
    %v286 = vmul.f32 %v285, %v157
    %v287 = vmul.f32 %v285, %v158
    %290 = vrot.lane.b32.xlu0 %v286, 127
    %v291 = vpop.permute.xlu0 %290
    %292 = vrot.lane.b32.xlu0 %v287, 127
    %v293 = vpop.permute.xlu0 %292
    %v294 = vsel %vm176, %v291, %v293
    %v296 = vadd.f32 %v283, %v294
    %s297 = sld [smem:[#allocation8 + $0xb]]
    %v298 = vstv %s297
    %v299 = vmul.f32 %v298, %v157
    %v300 = vmul.f32 %v298, %v158
    %303 = vrot.lane.b32.xlu0 %v299, 126
    %v304 = vpop.permute.xlu0 %303
    %305 = vrot.lane.b32.xlu0 %v300, 126
    %v306 = vpop.permute.xlu0 %305
    %v307 = vsel %vm190, %v304, %v306
    %v309 = vadd.f32 %v296, %v307
    %s310 = sld [smem:[#allocation12 + $0x1]]
    %v311 = vstv %s310
    %v312 = vmul.f32 %v309, %v311
    %s313 = sld [smem:[#allocation13 + $0x1]]
    %v314 = vstv %s313
    %v315 = vadd.f32 %v312, %v314
    %v316 = vmax.f32 %v315, 0.0
    %s317 = scalar_lea.vmem [#allocation16], 128
    %v318 = vld [vmem:[%s317] sm:$0xff]
    %v319 = vld [vmem:[%s317 + $0x8] sm:$0xff]
    %v320 = vld [vmem:[%s317 + $0x10] sm:$0xff]
    %v321 = vld [vmem:[%s317 + $0x18] sm:$0xff]
    %v322 = vld [vmem:[%s317 + $0x20] sm:$0xff]
    %v323 = vld [vmem:[%s317 + $0x28] sm:$0xff]
    %v324 = vld [vmem:[%s317 + $0x30] sm:$0xff]
    %v325 = vld [vmem:[%s317 + $0x38] sm:$0xff]
    %v326 = vld [vmem:[%s317 + $0x40] sm:$0xff]
    %v327 = vld [vmem:[%s317 + $0x48] sm:$0xff]
    %v328 = vld [vmem:[%s317 + $0x50] sm:$0xff]
    %v329 = vld [vmem:[%s317 + $0x58] sm:$0xff]
    %v330 = vld [vmem:[%s317 + $0x60] sm:$0xff]
    %v331 = vld [vmem:[%s317 + $0x68] sm:$0xff]
    %v332 = vld [vmem:[%s317 + $0x70] sm:$0xff]
    %v333 = vld [vmem:[%s317 + $0x78] sm:$0xff]
    %334 = vmatprep.subr.mxu0 0.0
    %335 = vmatpush1.msra.mxu0 %v333
    %336 = vmatprep.subr.mxu0 0.0
    %337 = vmatpush1.msra.mxu0 %v332
    %338 = vmatprep.subr.mxu0 0.0
    %339 = vmatpush1.msra.mxu0 %v331
    %340 = vmatprep.subr.mxu0 0.0
    %341 = vmatpush1.msra.mxu0 %v330
    %342 = vmatprep.subr.mxu0 0.0
    %343 = vmatpush1.msra.mxu0 %v329
    %344 = vmatprep.subr.mxu0 0.0
    %345 = vmatpush1.msra.mxu0 %v328
    %346 = vmatprep.subr.mxu0 0.0
    %347 = vmatpush1.msra.mxu0 %v327
    %348 = vmatprep.subr.mxu0 0.0
    %349 = vmatpush1.msra.mxu0 %v326
    %350 = vmatprep.subr.mxu0 0.0
    %351 = vmatpush1.msra.mxu0 %v325
    %352 = vmatprep.subr.mxu0 0.0
    %353 = vmatpush1.msra.mxu0 %v324
    %354 = vmatprep.subr.mxu0 0.0
    %355 = vmatpush1.msra.mxu0 %v323
    %356 = vmatprep.subr.mxu0 0.0
    %357 = vmatpush1.msra.mxu0 %v322
    %358 = vmatprep.subr.mxu0 0.0
    %359 = vmatpush1.msra.mxu0 %v321
    %360 = vmatprep.subr.mxu0 0.0
    %361 = vmatpush1.msra.mxu0 %v320
    %362 = vmatprep.subr.mxu0 0.0
    %363 = vmatpush1.msra.mxu0 %v319
    %364 = vmatprep.subr.mxu0 0.0
    %365 = vmatpush1.msra.mxu0 %v318
    %366 = vmatprep.subr.mxu0 0.0
    %367 = vmatpush2.msra.mxu0 0.0
    %368 = vmatprep.subr.mxu0 0.0
    %369 = vmatpush2.msra.mxu0 0.0
    %370 = vmatprep.subr.mxu0 0.0
    %371 = vmatpush2.msra.mxu0 0.0
    %372 = vmatprep.subr.mxu0 0.0
    %373 = vmatpush2.msra.mxu0 0.0
    %374 = vmatprep.subr.mxu0 0.0
    %375 = vmatpush2.msra.mxu0 0.0
    %376 = vmatprep.subr.mxu0 0.0
    %377 = vmatpush2.msra.mxu0 0.0
    %378 = vmatprep.subr.mxu0 0.0
    %379 = vmatpush2.msra.mxu0 0.0
    %380 = vmatprep.subr.mxu0 0.0
    %381 = vmatpush2.msra.mxu0 0.0
    %382 = vmatprep.subr.mxu0 0.0
    %383 = vmatpush2.msra.mxu0 0.0
    %384 = vmatprep.subr.mxu0 0.0
    %385 = vmatpush2.msra.mxu0 0.0
    %386 = vmatprep.subr.mxu0 0.0
    %387 = vmatpush2.msra.mxu0 0.0
    %388 = vmatprep.subr.mxu0 0.0
    %389 = vmatpush2.msra.mxu0 0.0
    %390 = vmatprep.subr.mxu0 0.0
    %391 = vmatpush2.msra.mxu0 0.0
    %392 = vmatprep.subr.mxu0 0.0
    %393 = vmatpush2.msra.mxu0 0.0
    %394 = vmatprep.subr.mxu0 0.0
    %395 = vmatpush2.msra.mxu0 0.0
    %396 = vmatprep.subr.mxu0 0.0
    %397 = vmatpush2.msra.mxu0 0.0
    %398 = vmatprep.mubr.f32.mxu0 0.0
    %399 = vmatmul.mubr.f32.gmra.mxu0 %v316
    %v400 = vpop.f32.mrf.mxu0
    %v401 = vadd.f32 0.0, %v400
    %v402 = vpop.f32.mrf.mxu0
    %403 = vdwg.mxu0
    %404 = vmatprep.subr.mxu0 0.0
    %405 = vmatpush1.msra.mxu0 %v246
    %406 = vmatprep.subr.mxu0 0.0
    %407 = vmatpush1.msra.mxu0 %v245
    %408 = vmatprep.subr.mxu0 0.0
    %409 = vmatpush1.msra.mxu0 %v244
    %410 = vmatprep.subr.mxu0 0.0
    %411 = vmatpush1.msra.mxu0 %v243
    %412 = vmatprep.subr.mxu0 0.0
    %413 = vmatpush1.msra.mxu0 %v242
    %414 = vmatprep.subr.mxu0 0.0
    %415 = vmatpush1.msra.mxu0 %v241
    %416 = vmatprep.subr.mxu0 0.0
    %417 = vmatpush1.msra.mxu0 %v240
    %418 = vmatprep.subr.mxu0 0.0
    %419 = vmatpush1.msra.mxu0 %v239
    %420 = vmatprep.subr.mxu0 0.0
    %421 = vmatpush1.msra.mxu0 %v238
    %422 = vmatprep.subr.mxu0 0.0
    %423 = vmatpush1.msra.mxu0 %v237
    %424 = vmatprep.subr.mxu0 0.0
    %425 = vmatpush1.msra.mxu0 %v236
    %426 = vmatprep.subr.mxu0 0.0
    %427 = vmatpush1.msra.mxu0 %v235
    %428 = vmatprep.subr.mxu0 0.0
    %429 = vmatpush1.msra.mxu0 %v234
    %430 = vmatprep.subr.mxu0 0.0
    %431 = vmatpush1.msra.mxu0 %v233
    %432 = vmatprep.subr.mxu0 0.0
    %433 = vmatpush1.msra.mxu0 %v232
    %434 = vmatprep.subr.mxu0 0.0
    %435 = vmatpush1.msra.mxu0 %v231
    %436 = vmatprep.subr.mxu0 0.0
    %437 = vmatpush2.msra.mxu0 0.0
    %438 = vmatprep.subr.mxu0 0.0
    %439 = vmatpush2.msra.mxu0 0.0
    %440 = vmatprep.subr.mxu0 0.0
    %441 = vmatpush2.msra.mxu0 0.0
    %442 = vmatprep.subr.mxu0 0.0
    %443 = vmatpush2.msra.mxu0 0.0
    %444 = vmatprep.subr.mxu0 0.0
    %445 = vmatpush2.msra.mxu0 0.0
    %446 = vmatprep.subr.mxu0 0.0
    %447 = vmatpush2.msra.mxu0 0.0
    %448 = vmatprep.subr.mxu0 0.0
    %449 = vmatpush2.msra.mxu0 0.0
    %450 = vmatprep.subr.mxu0 0.0
    %451 = vmatpush2.msra.mxu0 0.0
    %452 = vmatprep.subr.mxu0 0.0
    %453 = vmatpush2.msra.mxu0 0.0
    %454 = vmatprep.subr.mxu0 0.0
    %455 = vmatpush2.msra.mxu0 0.0
    %456 = vmatprep.subr.mxu0 0.0
    %457 = vmatpush2.msra.mxu0 0.0
    %458 = vmatprep.subr.mxu0 0.0
    %459 = vmatpush2.msra.mxu0 0.0
    %460 = vmatprep.subr.mxu0 0.0
    %461 = vmatpush2.msra.mxu0 0.0
    %462 = vmatprep.subr.mxu0 0.0
    %463 = vmatpush2.msra.mxu0 0.0
    %464 = vmatprep.subr.mxu0 0.0
    %465 = vmatpush2.msra.mxu0 0.0
    %466 = vmatprep.subr.mxu0 0.0
    %467 = vmatpush2.msra.mxu0 0.0
    %468 = vmatprep.mubr.f32.mxu0 0.0
    %469 = vmatmul.mubr.f32.gmra.mxu0 %v230
    %v470 = vpop.f32.mrf.mxu0
    %v471 = vadd.f32 %v401, %v470
    %v472 = vpop.f32.mrf.mxu0
    %473 = vdwg.mxu0
    %s474 = sld [smem:[#allocation10 + $0x2]]
    %v475 = vstv %s474
    %v476 = vadd.f32 %v475, 0.0
    %s477 = sld [smem:[#allocation8 + $0xc]]
    %v478 = vstv %s477
    %v479 = vmul.f32 %v478, %v151
    %v480 = vadd.f32 %v476, %v479
    %s481 = sld [smem:[#allocation8 + $0xd]]
    %v482 = vstv %s481
    %v483 = vmul.f32 %v482, %v151
    %v484 = vmul.f32 %v482, %v152
    %487 = vrot.lane.b32.xlu0 %v483, 127
    %v488 = vpop.permute.xlu0 %487
    %489 = vrot.lane.b32.xlu0 %v484, 127
    %v490 = vpop.permute.xlu0 %489
    %v491 = vsel %vm176, %v488, %v490
    %v493 = vadd.f32 %v480, %v491
    %s494 = sld [smem:[#allocation8 + $0xe]]
    %v495 = vstv %s494
    %v496 = vmul.f32 %v495, %v151
    %v497 = vmul.f32 %v495, %v152
    %500 = vrot.lane.b32.xlu0 %v496, 126
    %v501 = vpop.permute.xlu0 %500
    %502 = vrot.lane.b32.xlu0 %v497, 126
    %v503 = vpop.permute.xlu0 %502
    %v504 = vsel %vm190, %v501, %v503
    %v506 = vadd.f32 %v493, %v504
    %s507 = sld [smem:[#allocation8 + $0xf]]
    %v508 = vstv %s507
    %v509 = vmul.f32 %v508, %v157
    %v510 = vadd.f32 %v506, %v509
    %s511 = sld [smem:[#allocation8 + $0x10]]
    %v512 = vstv %s511
    %v513 = vmul.f32 %v512, %v157
    %v514 = vmul.f32 %v512, %v158
    %517 = vrot.lane.b32.xlu0 %v513, 127
    %v518 = vpop.permute.xlu0 %517
    %519 = vrot.lane.b32.xlu0 %v514, 127
    %v520 = vpop.permute.xlu0 %519
    %v521 = vsel %vm176, %v518, %v520
    %v523 = vadd.f32 %v510, %v521
    %s524 = sld [smem:[#allocation8 + $0x11]]
    %v525 = vstv %s524
    %v526 = vmul.f32 %v525, %v157
    %v527 = vmul.f32 %v525, %v158
    %530 = vrot.lane.b32.xlu0 %v526, 126
    %v531 = vpop.permute.xlu0 %530
    %532 = vrot.lane.b32.xlu0 %v527, 126
    %v533 = vpop.permute.xlu0 %532
    %v534 = vsel %vm190, %v531, %v533
    %v536 = vadd.f32 %v523, %v534
    %s537 = sld [smem:[#allocation12 + $0x2]]
    %v538 = vstv %s537
    %v539 = vmul.f32 %v536, %v538
    %s540 = sld [smem:[#allocation13 + $0x2]]
    %v541 = vstv %s540
    %v542 = vadd.f32 %v539, %v541
    %v543 = vmax.f32 %v542, 0.0
    %s544 = scalar_lea.vmem [#allocation16], 256
    %v545 = vld [vmem:[%s544] sm:$0xff]
    %v546 = vld [vmem:[%s544 + $0x8] sm:$0xff]
    %v547 = vld [vmem:[%s544 + $0x10] sm:$0xff]
    %v548 = vld [vmem:[%s544 + $0x18] sm:$0xff]
    %v549 = vld [vmem:[%s544 + $0x20] sm:$0xff]
    %v550 = vld [vmem:[%s544 + $0x28] sm:$0xff]
    %v551 = vld [vmem:[%s544 + $0x30] sm:$0xff]
    %v552 = vld [vmem:[%s544 + $0x38] sm:$0xff]
    %v553 = vld [vmem:[%s544 + $0x40] sm:$0xff]
    %v554 = vld [vmem:[%s544 + $0x48] sm:$0xff]
    %v555 = vld [vmem:[%s544 + $0x50] sm:$0xff]
    %v556 = vld [vmem:[%s544 + $0x58] sm:$0xff]
    %v557 = vld [vmem:[%s544 + $0x60] sm:$0xff]
    %v558 = vld [vmem:[%s544 + $0x68] sm:$0xff]
    %v559 = vld [vmem:[%s544 + $0x70] sm:$0xff]
    %v560 = vld [vmem:[%s544 + $0x78] sm:$0xff]
    %561 = vmatprep.subr.mxu0 0.0
    %562 = vmatpush1.msra.mxu0 %v560
    %563 = vmatprep.subr.mxu0 0.0
    %564 = vmatpush1.msra.mxu0 %v559
    %565 = vmatprep.subr.mxu0 0.0
    %566 = vmatpush1.msra.mxu0 %v558
    %567 = vmatprep.subr.mxu0 0.0
    %568 = vmatpush1.msra.mxu0 %v557
    %569 = vmatprep.subr.mxu0 0.0
    %570 = vmatpush1.msra.mxu0 %v556
    %571 = vmatprep.subr.mxu0 0.0
    %572 = vmatpush1.msra.mxu0 %v555
    %573 = vmatprep.subr.mxu0 0.0
    %574 = vmatpush1.msra.mxu0 %v554
    %575 = vmatprep.subr.mxu0 0.0
    %576 = vmatpush1.msra.mxu0 %v553
    %577 = vmatprep.subr.mxu0 0.0
    %578 = vmatpush1.msra.mxu0 %v552
    %579 = vmatprep.subr.mxu0 0.0
    %580 = vmatpush1.msra.mxu0 %v551
    %581 = vmatprep.subr.mxu0 0.0
    %582 = vmatpush1.msra.mxu0 %v550
    %583 = vmatprep.subr.mxu0 0.0
    %584 = vmatpush1.msra.mxu0 %v549
    %585 = vmatprep.subr.mxu0 0.0
    %586 = vmatpush1.msra.mxu0 %v548
    %587 = vmatprep.subr.mxu0 0.0
    %588 = vmatpush1.msra.mxu0 %v547
    %589 = vmatprep.subr.mxu0 0.0
    %590 = vmatpush1.msra.mxu0 %v546
    %591 = vmatprep.subr.mxu0 0.0
    %592 = vmatpush1.msra.mxu0 %v545
    %593 = vmatprep.subr.mxu0 0.0
    %594 = vmatpush2.msra.mxu0 0.0
    %595 = vmatprep.subr.mxu0 0.0
    %596 = vmatpush2.msra.mxu0 0.0
    %597 = vmatprep.subr.mxu0 0.0
    %598 = vmatpush2.msra.mxu0 0.0
    %599 = vmatprep.subr.mxu0 0.0
    %600 = vmatpush2.msra.mxu0 0.0
    %601 = vmatprep.subr.mxu0 0.0
    %602 = vmatpush2.msra.mxu0 0.0
    %603 = vmatprep.subr.mxu0 0.0
    %604 = vmatpush2.msra.mxu0 0.0
    %605 = vmatprep.subr.mxu0 0.0
    %606 = vmatpush2.msra.mxu0 0.0
    %607 = vmatprep.subr.mxu0 0.0
    %608 = vmatpush2.msra.mxu0 0.0
    %609 = vmatprep.subr.mxu0 0.0
    %610 = vmatpush2.msra.mxu0 0.0
    %611 = vmatprep.subr.mxu0 0.0
    %612 = vmatpush2.msra.mxu0 0.0
    %613 = vmatprep.subr.mxu0 0.0
    %614 = vmatpush2.msra.mxu0 0.0
    %615 = vmatprep.subr.mxu0 0.0
    %616 = vmatpush2.msra.mxu0 0.0
    %617 = vmatprep.subr.mxu0 0.0
    %618 = vmatpush2.msra.mxu0 0.0
    %619 = vmatprep.subr.mxu0 0.0
    %620 = vmatpush2.msra.mxu0 0.0
    %621 = vmatprep.subr.mxu0 0.0
    %622 = vmatpush2.msra.mxu0 0.0
    %623 = vmatprep.subr.mxu0 0.0
    %624 = vmatpush2.msra.mxu0 0.0
    %625 = vmatprep.mubr.f32.mxu0 0.0
    %626 = vmatmul.mubr.f32.gmra.mxu0 %v543
    %v627 = vpop.f32.mrf.mxu0
    %v628 = vadd.f32 0.0, %v627
    %v629 = vpop.f32.mrf.mxu0
    %630 = vdwg.mxu0
    %v631 = vadd.f32 %v471, %v628
    %s632 = sld [smem:[#allocation10 + $0x3]]
    %v633 = vstv %s632
    %v634 = vadd.f32 %v633, 0.0
    %s635 = sld [smem:[#allocation8 + $0x12]]
    %v636 = vstv %s635
    %v637 = vmul.f32 %v636, %v151
    %v638 = vadd.f32 %v634, %v637
    %s639 = sld [smem:[#allocation8 + $0x13]]
    %v640 = vstv %s639
    %v641 = vmul.f32 %v640, %v151
    %v642 = vmul.f32 %v640, %v152
    %645 = vrot.lane.b32.xlu0 %v641, 127
    %v646 = vpop.permute.xlu0 %645
    %647 = vrot.lane.b32.xlu0 %v642, 127
    %v648 = vpop.permute.xlu0 %647
    %v649 = vsel %vm176, %v646, %v648
    %v651 = vadd.f32 %v638, %v649
    %s652 = sld [smem:[#allocation8 + $0x14]]
    %v653 = vstv %s652
    %v654 = vmul.f32 %v653, %v151
    %v655 = vmul.f32 %v653, %v152
    %658 = vrot.lane.b32.xlu0 %v654, 126
    %v659 = vpop.permute.xlu0 %658
    %660 = vrot.lane.b32.xlu0 %v655, 126
    %v661 = vpop.permute.xlu0 %660
    %v662 = vsel %vm190, %v659, %v661
    %v664 = vadd.f32 %v651, %v662
    %s665 = sld [smem:[#allocation8 + $0x15]]
    %v666 = vstv %s665
    %v667 = vmul.f32 %v666, %v157
    %v668 = vadd.f32 %v664, %v667
    %s669 = sld [smem:[#allocation8 + $0x16]]
    %v670 = vstv %s669
    %v671 = vmul.f32 %v670, %v157
    %v672 = vmul.f32 %v670, %v158
    %675 = vrot.lane.b32.xlu0 %v671, 127
    %v676 = vpop.permute.xlu0 %675
    %677 = vrot.lane.b32.xlu0 %v672, 127
    %v678 = vpop.permute.xlu0 %677
    %v679 = vsel %vm176, %v676, %v678
    %v681 = vadd.f32 %v668, %v679
    %s682 = sld [smem:[#allocation8 + $0x17]]
    %v683 = vstv %s682
    %v684 = vmul.f32 %v683, %v157
    %v685 = vmul.f32 %v683, %v158
    %688 = vrot.lane.b32.xlu0 %v684, 126
    %v689 = vpop.permute.xlu0 %688
    %690 = vrot.lane.b32.xlu0 %v685, 126
    %v691 = vpop.permute.xlu0 %690
    %v692 = vsel %vm190, %v689, %v691
    %v694 = vadd.f32 %v681, %v692
    %s695 = sld [smem:[#allocation12 + $0x3]]
    %v696 = vstv %s695
    %v697 = vmul.f32 %v694, %v696
    %s698 = sld [smem:[#allocation13 + $0x3]]
    %v699 = vstv %s698
    %v700 = vadd.f32 %v697, %v699
    %v701 = vmax.f32 %v700, 0.0
    %s702 = scalar_lea.vmem [#allocation16], 384
    %v703 = vld [vmem:[%s702] sm:$0xff]
    %v704 = vld [vmem:[%s702 + $0x8] sm:$0xff]
    %v705 = vld [vmem:[%s702 + $0x10] sm:$0xff]
    %v706 = vld [vmem:[%s702 + $0x18] sm:$0xff]
    %v707 = vld [vmem:[%s702 + $0x20] sm:$0xff]
    %v708 = vld [vmem:[%s702 + $0x28] sm:$0xff]
    %v709 = vld [vmem:[%s702 + $0x30] sm:$0xff]
    %v710 = vld [vmem:[%s702 + $0x38] sm:$0xff]
    %v711 = vld [vmem:[%s702 + $0x40] sm:$0xff]
    %v712 = vld [vmem:[%s702 + $0x48] sm:$0xff]
    %v713 = vld [vmem:[%s702 + $0x50] sm:$0xff]
    %v714 = vld [vmem:[%s702 + $0x58] sm:$0xff]
    %v715 = vld [vmem:[%s702 + $0x60] sm:$0xff]
    %v716 = vld [vmem:[%s702 + $0x68] sm:$0xff]
    %v717 = vld [vmem:[%s702 + $0x70] sm:$0xff]
    %v718 = vld [vmem:[%s702 + $0x78] sm:$0xff]
    %719 = vmatprep.subr.mxu0 0.0
    %720 = vmatpush1.msra.mxu0 %v718
    %721 = vmatprep.subr.mxu0 0.0
    %722 = vmatpush1.msra.mxu0 %v717
    %723 = vmatprep.subr.mxu0 0.0
    %724 = vmatpush1.msra.mxu0 %v716
    %725 = vmatprep.subr.mxu0 0.0
    %726 = vmatpush1.msra.mxu0 %v715
    %727 = vmatprep.subr.mxu0 0.0
    %728 = vmatpush1.msra.mxu0 %v714
    %729 = vmatprep.subr.mxu0 0.0
    %730 = vmatpush1.msra.mxu0 %v713
    %731 = vmatprep.subr.mxu0 0.0
    %732 = vmatpush1.msra.mxu0 %v712
    %733 = vmatprep.subr.mxu0 0.0
    %734 = vmatpush1.msra.mxu0 %v711
    %735 = vmatprep.subr.mxu0 0.0
    %736 = vmatpush1.msra.mxu0 %v710
    %737 = vmatprep.subr.mxu0 0.0
    %738 = vmatpush1.msra.mxu0 %v709
    %739 = vmatprep.subr.mxu0 0.0
    %740 = vmatpush1.msra.mxu0 %v708
    %741 = vmatprep.subr.mxu0 0.0
    %742 = vmatpush1.msra.mxu0 %v707
    %743 = vmatprep.subr.mxu0 0.0
    %744 = vmatpush1.msra.mxu0 %v706
    %745 = vmatprep.subr.mxu0 0.0
    %746 = vmatpush1.msra.mxu0 %v705
    %747 = vmatprep.subr.mxu0 0.0
    %748 = vmatpush1.msra.mxu0 %v704
    %749 = vmatprep.subr.mxu0 0.0
    %750 = vmatpush1.msra.mxu0 %v703
    %751 = vmatprep.subr.mxu0 0.0
    %752 = vmatpush2.msra.mxu0 0.0
    %753 = vmatprep.subr.mxu0 0.0
    %754 = vmatpush2.msra.mxu0 0.0
    %755 = vmatprep.subr.mxu0 0.0
    %756 = vmatpush2.msra.mxu0 0.0
    %757 = vmatprep.subr.mxu0 0.0
    %758 = vmatpush2.msra.mxu0 0.0
    %759 = vmatprep.subr.mxu0 0.0
    %760 = vmatpush2.msra.mxu0 0.0
    %761 = vmatprep.subr.mxu0 0.0
    %762 = vmatpush2.msra.mxu0 0.0
    %763 = vmatprep.subr.mxu0 0.0
    %764 = vmatpush2.msra.mxu0 0.0
    %765 = vmatprep.subr.mxu0 0.0
    %766 = vmatpush2.msra.mxu0 0.0
    %767 = vmatprep.subr.mxu0 0.0
    %768 = vmatpush2.msra.mxu0 0.0
    %769 = vmatprep.subr.mxu0 0.0
    %770 = vmatpush2.msra.mxu0 0.0
    %771 = vmatprep.subr.mxu0 0.0
    %772 = vmatpush2.msra.mxu0 0.0
    %773 = vmatprep.subr.mxu0 0.0
    %774 = vmatpush2.msra.mxu0 0.0
    %775 = vmatprep.subr.mxu0 0.0
    %776 = vmatpush2.msra.mxu0 0.0
    %777 = vmatprep.subr.mxu0 0.0
    %778 = vmatpush2.msra.mxu0 0.0
    %779 = vmatprep.subr.mxu0 0.0
    %780 = vmatpush2.msra.mxu0 0.0
    %781 = vmatprep.subr.mxu0 0.0
    %782 = vmatpush2.msra.mxu0 0.0
    %783 = vmatprep.mubr.f32.mxu0 0.0
    %784 = vmatmul.mubr.f32.gmra.mxu0 %v701
    %v785 = vpop.f32.mrf.mxu0
    %v786 = vadd.f32 0.0, %v785
    %v787 = vpop.f32.mrf.mxu0
    %788 = vdwg.mxu0
    %v789 = vadd.f32 %v631, %v786
    %v790 = vld [vmem:[%s9] sm:$0x1]
    %v792 = vlaneseq
    %v793 = vshrl.u32 %v792, 7
    %v794 = vsub.s32 0, %v793
    %v795 = vrot.slane %v790, %v794
    %v797 = vadd.f32 %v789, %v795
    %v798 = vld [vmem:[%s10] sm:$0x1]
    %v800 = vlaneseq
    %v801 = vshrl.u32 %v800, 7
    %v802 = vsub.s32 0, %v801
    %v803 = vrot.slane %v798, %v802
    %v805 = vmul.f32 %v797, %v803
    %v806 = vld [vmem:[%s11] sm:$0x1]
    %v808 = vlaneseq
    %v809 = vshrl.u32 %v808, 7
    %v810 = vsub.s32 0, %v809
    %v811 = vrot.slane %v806, %v810
    %v813 = vadd.f32 %v805, %v811
    %v814 = vmax.f32 %v813, 0.0
    %v815 = vpack.c.bf16 %v814, %v814
    %816 = vst [vmem:[#allocation18] sm:$0xf] %v815
    // Predicated region
    $region82: #{tpu_custom_call.1} parent=1 // pred_check
      _
    $region83: #{tpu_custom_call.1} parent=1 // pred_check_branch
      %818 = sbr.rel (0) target = $region85
    $region84: #{tpu_custom_call.1} parent=1 // pred_region
      %s820 = ssub.s32 64, 64
      %821 = vsyncadd [#allocation4], %s820
      %s823 = sshll.u32 [#allocation18], 4
      %s824 = int_to_ptr.vmem [resolvable:$true] %s823
      %826 = dma.vmem_to_hbm [thread:$0]  %s824, 64, %s12, [#allocation4]
    $region85: #{tpu_custom_call.1} parent=1 // pred_fallthru
      _
    // Predicated region
    $region86: #{tpu_custom_call.1} parent=1 // pred_check
      _
    $region87: #{tpu_custom_call.1} parent=1 // pred_check_branch
      %828 = sbr.rel (0) target = $region89
    $region88: #{tpu_custom_call.1} parent=1 // pred_region
      %829 = dma.done [#allocation4], 64
    $region89: #{tpu_custom_call.1} parent=1 // pred_fallthru
      _
    %830 = vsyncpa [#allocation3], 1
    %831 = vsyncpa [#allocation17], 1
    %832 = vsyncpa [#allocation4], 1
    %833 = vsyncpa [#allocation5], 1
    %834 = vsyncpa [#allocation11], 1
    %835 = vsyncpa [#allocation14], 1
    %836 = vsyncpa [#allocation6], 1
    %837 = vsyncpa [#allocation9], 1

</llo_original>
